<compile_context>
chip_gen: v7x
topology: tpu7x:2x2x1
jax: 0.10.0
libtpu: 0.0.40
codegen_flags: <defaults>
</compile_context>

<pallas_src>
import functools

import jax
import jax.numpy as jnp
from jax import lax
from jax.experimental import pallas as pl
from jax.experimental.pallas import tpu as pltpu

DIAG_CHANNEL = 128


def _fcgc_kernel(x_ref, gexp_ref, wstack_ref, badj_ref, mask_ref, o_ref, *, res_connect: bool):
    f32 = jnp.float32
    x = x_ref[0]                                   # (C, TBN)   TB batches folded into lanes
    g = gexp_ref[0]                                # (128, TBN) sigmoid(d) - 0.5, lane-expanded

    # One stacked MXU matmul for both pointwise (kernel_size=1) convs:
    #   rows [0,128)      -> adjacency_conv (pre-bias),   rows [128,128+Co) -> weight @ x
    st = jnp.dot(wstack_ref[...], x, preferred_element_type=f32)        # (128+Co, TBN)
    xa = st[:DIAG_CHANNEL] + badj_ref[...]                              # (128, TBN)
    wx = st[DIAG_CHANNEL:]                                              # (Co,  TBN)

    # Faithful diagonal matrix: D = 0.5*J + diag(sigmoid(d) - 0.5)  (sigmoid applied
    # after torch.diag, so off-diagonal entries are sigmoid(0) = 0.5).  Column-wise:
    #   (D @ xa)[:, j] = g[:, j] * xa[:, j] + 0.5 * sum_k xa[k, j]
    s = jnp.sum(xa, axis=0, keepdims=True)                              # (1, TBN)
    rhs = g * xa + 0.5 * s                                              # (128, TBN) == D @ xa

    # Block-diagonal adjacency for all TB batches in ONE (TBN, TBN) matmul; cross-batch
    # 64x64 blocks are garbage and get zeroed by the precomputed block-diagonal mask.
    A = lax.dot_general(xa, rhs, dimension_numbers=(((0,), (0,)), ((), ())),
                        preferred_element_type=f32)                     # (TBN, TBN)
    A = jnp.maximum(A, 0.0) * mask_ref[...]                             # relu + zero off-blocks

    # A_hat = A + I; deg = rsqrt(rowsum(A_hat)).  A is symmetric up to MXU rounding,
    # so column sums stand in for row sums (keeps deg in (1, TBN) lane layout).
    deg = lax.rsqrt(jnp.sum(A, axis=0, keepdims=True) + 1.0)            # (1, TBN)

    # out = (W @ x) @ (D_deg A_hat D_deg) = ((wx*deg) @ relu(A) + wx*deg) * deg
    y = wx * deg
    out = (jnp.dot(y, A, preferred_element_type=f32) + y) * deg         # (Co, TBN)
    out = jnp.maximum(out, 0.0)
    if res_connect:
        out = out + x
    # Single lane-dense store of the full slab (review item #1).
    o_ref[0] = out.astype(o_ref.dtype)


@functools.partial(jax.jit, static_argnames=("res_connect", "batch_block"))
def fully_connect_gc_layer(x, w_diag, b_diag, w_adj, b_adj, weight, *,
                           res_connect=True, batch_block=4):
    """x: (B, C, N); conv weights: (128, C); conv biases: (128, 1); weight: (Co, C)."""
    HI = lax.Precision.HIGHEST
    f32 = jnp.float32
    B, C, N = x.shape
    Co = weight.shape[0]
    if res_connect and Co != C:
        raise ValueError("res_connect=True requires out_channel == in_channel")

    # Batch-blocking: TB*N lanes per grid step.  Default 4 -> 256 lanes (v6e/v7x MXU
    # fill); prefer batch_block=2 on v5e (128x128 MXU).  Keep nb >= 2 where possible so
    # the "parallel" grid axis shards across v7x's two TensorCores (no-op on v5e/v6e).
    tb = max(1, min(batch_block, B))
    if B > 1:
        tb = min(tb, (B + 1) // 2)
    nb = pl.cdiv(B, tb)
    Bp = nb * tb
    tbn = tb * N

    xp = x if Bp == B else jnp.pad(x, ((0, Bp - B), (0, 0), (0, 0)))

    # Fold TB batch items into the lane axis: batch t of a block owns lanes [t*N,(t+1)*N).
    # (Producer-side emission of this folded layout would remove these tiny HBM passes.)
    x_blk = xp.reshape(nb, tb, C, N).transpose(0, 2, 1, 3).reshape(nb, C, tbn)

    # Diagonal branch hoisted to plain JAX (review): mean is linear, so
    # d = sigmoid(W_diag @ mean_N(x) + b_diag); the kernel only needs g = d - 0.5.
    mean_x = jnp.mean(xp, axis=2)                                              # (Bp, C)
    d = jax.nn.sigmoid(jnp.dot(mean_x, w_diag.T, precision=HI)
                       + b_diag[:, 0][None, :])                                # (Bp, 128)
    g = (d - 0.5).astype(f32)
    g_exp = jnp.repeat(g.reshape(nb, tb, DIAG_CHANNEL).transpose(0, 2, 1),
                       N, axis=2)                                              # (nb, 128, tbn)

    # Block-diagonal mask (constant across the grid, passed as a regular input).
    blk = jnp.arange(tbn, dtype=jnp.int32) // N
    mask = (blk[:, None] == blk[None, :]).astype(f32)                          # (tbn, tbn)

    # Stack adjacency_conv weight with self.weight: one MXU matmul per slab.
    w_stack = jnp.concatenate([w_adj, weight], axis=0).astype(f32)             # (128+Co, C)

    flops = 2 * nb * tbn * ((DIAG_CHANNEL + Co) * C + DIAG_CHANNEL * tbn + Co * tbn)
    bytes_accessed = 4 * (nb * C * tbn + nb * DIAG_CHANNEL * tbn + tbn * tbn
                          + (DIAG_CHANNEL + Co) * C + DIAG_CHANNEL + nb * Co * tbn)

    kernel = functools.partial(_fcgc_kernel, res_connect=res_connect)
    out_blk = pl.pallas_call(
        kernel,
        out_shape=jax.ShapeDtypeStruct((nb, Co, tbn), x.dtype),
        grid_spec=pltpu.PrefetchScalarGridSpec(
            num_scalar_prefetch=0,
            grid=(nb,),
            in_specs=[
                pl.BlockSpec((1, C, tbn), lambda i: (i, 0, 0)),                # x (folded)
                pl.BlockSpec((1, DIAG_CHANNEL, tbn), lambda i: (i, 0, 0)),     # g, lane-expanded
                pl.BlockSpec((DIAG_CHANNEL + Co, C), lambda i: (0, 0)),        # [w_adj; weight]
                pl.BlockSpec((DIAG_CHANNEL, 1), lambda i: (0, 0)),             # adjacency bias
                pl.BlockSpec((tbn, tbn), lambda i: (0, 0)),                    # block-diag mask
            ],
            out_specs=pl.BlockSpec((1, Co, tbn), lambda i: (i, 0, 0)),
        ),
        compiler_params=pltpu.CompilerParams(dimension_semantics=("parallel",)),
        cost_estimate=pl.CostEstimate(flops=flops, transcendentals=nb * tbn,
                                      bytes_accessed=bytes_accessed),
    )(x_blk, g_exp, w_stack, b_adj.astype(f32), mask)

    out = out_blk.reshape(nb, Co, tb, N).transpose(0, 2, 1, 3).reshape(Bp, Co, N)
    return out[:B] if Bp != B else out


def ref_forward(x, w_diag, b_diag, w_adj, b_adj, weight, res_connect=True):
    """Pure-JAX reference mirroring the PyTorch forward exactly, including that
    sigmoid is applied to the full diag-embedded matrix (off-diagonal -> 0.5)."""
    HI = lax.Precision.HIGHEST
    B, C, N = x.shape
    # diagonal branch: conv1d(k=1) -> avg_pool1d(N) -> torch.diag -> sigmoid
    xd = jnp.einsum('oc,bcn->bon', w_diag, x, precision=HI) + b_diag[None]     # (B,128,N)
    dvec = jnp.mean(xd, axis=2)                                                # (B,128)
    eye128 = jnp.eye(DIAG_CHANNEL, dtype=x.dtype)
    Dm = jax.nn.sigmoid(dvec[:, :, None] * eye128[None])                       # (B,128,128)
    # adjacency branch
    xa = jnp.einsum('oc,bcn->bon', w_adj, x, precision=HI) + b_adj[None]       # (B,128,N)
    A = jnp.matmul(jnp.matmul(jnp.swapaxes(xa, 1, 2), Dm, precision=HI), xa,
                   precision=HI)                                               # (B,N,N)
    A_hat = jnp.maximum(A, 0.0) + jnp.eye(N, dtype=x.dtype)[None]
    deg = jnp.power(jnp.sum(A_hat, axis=2), -0.5)                              # torch.sum(., 1)
    A_norm = deg[:, :, None] * A_hat * deg[:, None, :]
    out = jnp.einsum('oc,bcn->bon', weight,
                     jnp.matmul(x, A_norm, precision=HI), precision=HI)        # (B,Co,N)
    out = jnp.maximum(out, 0.0)
    if res_connect:
        out = out + x
    return out


if __name__ == "__main__":
    B = 8
    C_IN = 32
    C_OUT = 32          # residual connection requires out_channel == in_channel
    N = 64              # fixed by diagonal_i = eye(64) in the PyTorch module

    key = jax.random.PRNGKey(0)
    kx, k1, k2, k3, k4, k5 = jax.random.split(key, 6)

    x = jax.random.normal(kx, (B, C_IN, N), dtype=jnp.float32)

    # Conv1d(kernel_size=1) params (weights squeezed from (O, I, 1) -> (O, I)).
    w_adj = jax.random.normal(k1, (DIAG_CHANNEL, C_IN), dtype=jnp.float32) * 0.05
    b_adj = jax.random.normal(k2, (DIAG_CHANNEL, 1), dtype=jnp.float32) * 0.05
    w_diag = jax.random.normal(k3, (DIAG_CHANNEL, C_IN), dtype=jnp.float32) * 0.05
    b_diag = jax.random.normal(k4, (DIAG_CHANNEL, 1), dtype=jnp.float32) * 0.05
    # self.weight ~ Normal(0, 0.01)
    weight = jax.random.normal(k5, (C_OUT, C_IN), dtype=jnp.float32) * 0.01

    out = fully_connect_gc_layer(x, w_diag, b_diag, w_adj, b_adj, weight,
                                 res_connect=True, batch_block=4)
    out = jax.block_until_ready(out)

    ref = ref_forward(x, w_diag, b_diag, w_adj, b_adj, weight, res_connect=True)
    assert out.shape == (B, C_OUT, N)
    assert jnp.allclose(out, ref, atol=1e-4, rtol=1e-4), "mismatch vs reference"

    # Exercise the padded-tail / non-256-lane path (B=5 -> tb=3, nb=2, one padded batch).
    out_tail = fully_connect_gc_layer(x[:5], w_diag, b_diag, w_adj, b_adj, weight,
                                      res_connect=True, batch_block=4)
    out_tail = jax.block_until_ready(out_tail)
    assert out_tail.shape == (5, C_OUT, N)
    assert jnp.allclose(out_tail, ref[:5], atol=1e-4, rtol=1e-4), "mismatch on padded tail"

    print("KERNEL_OK")
</pallas_src>

<mosaic_0001>
module attributes {stable_mosaic.version = 11 : i64} {
  func.func @_fcgc_kernel(%arg0: i32, %arg1: memref<1x32x256xf32, #tpu.memory_space<vmem>>, %arg2: memref<1x128x256xf32, #tpu.memory_space<vmem>>, %arg3: memref<160x32xf32, #tpu.memory_space<vmem>>, %arg4: memref<128x1xf32, #tpu.memory_space<vmem>>, %arg5: memref<256x256xf32, #tpu.memory_space<vmem>>, %arg6: memref<1x32x256xf32, #tpu.memory_space<vmem>>) attributes {dimension_semantics = [#tpu.dimension_semantics<parallel>], iteration_bounds = array<i64: 2>, scalar_prefetch = 0 : i64, scratch_operands = 0 : i64, tpu.core_type = #tpu.core_type<tc>, window_params = [{transform_indices = @transform_0, window_bounds = array<i64: 1, 32, 256>}, {transform_indices = @transform_1, window_bounds = array<i64: 1, 128, 256>}, {pipeline_mode = #tpu.pipeline_mode<synchronous>, transform_indices = @transform_2, window_bounds = array<i64: 160, 32>}, {pipeline_mode = #tpu.pipeline_mode<synchronous>, transform_indices = @transform_3, window_bounds = array<i64: 128, 1>}, {pipeline_mode = #tpu.pipeline_mode<synchronous>, transform_indices = @transform_4, window_bounds = array<i64: 256, 256>}, {transform_indices = @transform_5, window_bounds = array<i64: 1, 32, 256>}]} {
    %c0 = arith.constant 0 : index
    %c0_0 = arith.constant 0 : index
    %c0_1 = arith.constant 0 : index
    %0 = vector.load %arg1[%c0, %c0_0, %c0_1] : memref<1x32x256xf32, #tpu.memory_space<vmem>>, vector<1x32x256xf32>
    %1 = vector.shape_cast %0 : vector<1x32x256xf32> to vector<32x256xf32>
    %c0_2 = arith.constant 0 : index
    %c0_3 = arith.constant 0 : index
    %c0_4 = arith.constant 0 : index
    %2 = vector.load %arg2[%c0_2, %c0_3, %c0_4] : memref<1x128x256xf32, #tpu.memory_space<vmem>>, vector<1x128x256xf32>
    %3 = vector.shape_cast %2 : vector<1x128x256xf32> to vector<128x256xf32>
    %c0_5 = arith.constant 0 : index
    %c0_6 = arith.constant 0 : index
    %4 = vector.load %arg3[%c0_5, %c0_6] : memref<160x32xf32, #tpu.memory_space<vmem>>, vector<160x32xf32>
    %cst = arith.constant dense<0.000000e+00> : vector<160x256xf32>
    %5 = tpu.matmul %4, %1, %cst {dimension_numbers = #tpu.dot_dimension_numbers<[1], [0], [0], [1], [0, 0, 1, 1], [], []>} : vector<160x32xf32>, vector<32x256xf32>, vector<160x256xf32> -> vector<160x256xf32>
    %6 = vector.extract_strided_slice %5 {offsets = [0, 0], sizes = [128, 256], strides = [1, 1]} : vector<160x256xf32> to vector<128x256xf32>
    %c0_7 = arith.constant 0 : index
    %c0_8 = arith.constant 0 : index
    %7 = vector.load %arg4[%c0_7, %c0_8] : memref<128x1xf32, #tpu.memory_space<vmem>>, vector<128x1xf32>
    %8 = vector.broadcast %7 : vector<128x1xf32> to vector<128x256xf32>
    %9 = arith.addf %6, %8 : vector<128x256xf32>
    %10 = vector.extract_strided_slice %5 {offsets = [128, 0], sizes = [32, 256], strides = [1, 1]} : vector<160x256xf32> to vector<32x256xf32>
    %cst_9 = arith.constant dense<0.000000e+00> : vector<256xf32>
    %11 = vector.multi_reduction <add>, %9, %cst_9 [0] : vector<128x256xf32> to vector<256xf32>
    %12 = vector.shape_cast %11 : vector<256xf32> to vector<1x256xf32>
    %13 = arith.mulf %3, %9 : vector<128x256xf32>
    %cst_10 = arith.constant 5.000000e-01 : f32
    %14 = vector.broadcast %cst_10 : f32 to vector<1x256xf32>
    %15 = arith.mulf %14, %12 : vector<1x256xf32>
    %16 = vector.broadcast %15 : vector<1x256xf32> to vector<128x256xf32>
    %17 = arith.addf %13, %16 : vector<128x256xf32>
    %cst_11 = arith.constant dense<0.000000e+00> : vector<256x256xf32>
    %18 = tpu.matmul %9, %17, %cst_11 {dimension_numbers = #tpu.dot_dimension_numbers<[0], [0], [1], [1], [0, 1, 1, 1], [], []>} : vector<128x256xf32>, vector<128x256xf32>, vector<256x256xf32> -> vector<256x256xf32>
    %cst_12 = arith.constant 0.000000e+00 : f32
    %19 = vector.broadcast %cst_12 : f32 to vector<256x256xf32>
    %20 = arith.maximumf %18, %19 : vector<256x256xf32>
    %c0_13 = arith.constant 0 : index
    %c0_14 = arith.constant 0 : index
    %21 = vector.load %arg5[%c0_13, %c0_14] : memref<256x256xf32, #tpu.memory_space<vmem>>, vector<256x256xf32>
    %22 = arith.mulf %20, %21 : vector<256x256xf32>
    %cst_15 = arith.constant dense<0.000000e+00> : vector<256xf32>
    %23 = vector.multi_reduction <add>, %22, %cst_15 [0] : vector<256x256xf32> to vector<256xf32>
    %24 = vector.shape_cast %23 : vector<256xf32> to vector<1x256xf32>
    %cst_16 = arith.constant 1.000000e+00 : f32
    %25 = vector.broadcast %cst_16 : f32 to vector<1x256xf32>
    %26 = arith.addf %24, %25 : vector<1x256xf32>
    %27 = math.rsqrt %26 : vector<1x256xf32>
    %28 = vector.broadcast %27 : vector<1x256xf32> to vector<32x256xf32>
    %29 = arith.mulf %10, %28 : vector<32x256xf32>
    %cst_17 = arith.constant dense<0.000000e+00> : vector<32x256xf32>
    %30 = tpu.matmul %29, %22, %cst_17 {dimension_numbers = #tpu.dot_dimension_numbers<[1], [0], [0], [1], [0, 0, 1, 1], [], []>} : vector<32x256xf32>, vector<256x256xf32>, vector<32x256xf32> -> vector<32x256xf32>
    %31 = arith.addf %30, %29 : vector<32x256xf32>
    %32 = vector.broadcast %27 : vector<1x256xf32> to vector<32x256xf32>
    %33 = arith.mulf %31, %32 : vector<32x256xf32>
    %cst_18 = arith.constant 0.000000e+00 : f32
    %34 = vector.broadcast %cst_18 : f32 to vector<32x256xf32>
    %35 = arith.maximumf %33, %34 : vector<32x256xf32>
    %36 = arith.addf %35, %1 : vector<32x256xf32>
    %c0_19 = arith.constant 0 : index
    %c0_20 = arith.constant 0 : index
    %c0_21 = arith.constant 0 : index
    %37 = vector.load %arg6[%c0_19, %c0_20, %c0_21] : memref<1x32x256xf32, #tpu.memory_space<vmem>>, vector<1x32x256xf32>
    %38 = vector.shape_cast %37 : vector<1x32x256xf32> to vector<32x256xf32>
    %39 = vector.shape_cast %36 : vector<32x256xf32> to vector<1x32x256xf32>
    tpu.vector_store %arg6[%c0_19, %c0_20, %c0_21], %39 {strides = array<i32>} : memref<1x32x256xf32, #tpu.memory_space<vmem>>, vector<1x32x256xf32>,
    return
  }
  func.func @transform_0(%arg0: i32) -> (i32, i32, i32) {
    %c0_i32 = arith.constant 0 : i32
    %c0_i32_0 = arith.constant 0 : i32
    %c0_i32_1 = arith.constant 0 : i32
    return %arg0, %c0_i32, %c0_i32_0 : i32, i32, i32
  }
  func.func @transform_1(%arg0: i32) -> (i32, i32, i32) {
    %c0_i32 = arith.constant 0 : i32
    %c0_i32_0 = arith.constant 0 : i32
    %c0_i32_1 = arith.constant 0 : i32
    return %arg0, %c0_i32, %c0_i32_0 : i32, i32, i32
  }
  func.func @transform_2(%arg0: i32) -> (i32, i32) {
    %c0_i32 = arith.constant 0 : i32
    %c0_i32_0 = arith.constant 0 : i32
    %c0_i32_1 = arith.constant 0 : i32
    return %c0_i32, %c0_i32_0 : i32, i32
  }
  func.func @transform_3(%arg0: i32) -> (i32, i32) {
    %c0_i32 = arith.constant 0 : i32
    %c0_i32_0 = arith.constant 0 : i32
    %c0_i32_1 = arith.constant 0 : i32
    return %c0_i32, %c0_i32_0 : i32, i32
  }
  func.func @transform_4(%arg0: i32) -> (i32, i32) {
    %c0_i32 = arith.constant 0 : i32
    %c0_i32_0 = arith.constant 0 : i32
    %c0_i32_1 = arith.constant 0 : i32
    return %c0_i32, %c0_i32_0 : i32, i32
  }
  func.func @transform_5(%arg0: i32) -> (i32, i32, i32) {
    %c0_i32 = arith.constant 0 : i32
    %c0_i32_0 = arith.constant 0 : i32
    %c0_i32_1 = arith.constant 0 : i32
    return %arg0, %c0_i32, %c0_i32_0 : i32, i32, i32
  }
}

</mosaic_0001>

<llo_original>
// kernel: fully_connect_gc_layer.1
$region0: #{fully_connect_gc_layer.1}
  #allocation0 [shape = 'u32[]', space=smem, size = 0x4, offset = 0x4, fixed_abs, tag = 'smem constant byte address 0x4 - core index']
  #allocation1 [shape = 'u32[144,128]{1,0:T(1,128)}', space=vmem, size = 0x12000, scoped, tag = 'internal scratch']
  %s0 = inlined_call_operand.vmem [shape: f32[2,32,256], index: 0, kind: input, shape index: {}]
  %s1 = inlined_call_operand.vmem [shape: f32[2,128,256], index: 1, kind: input, shape index: {}]
  %s2 = inlined_call_operand.vmem [shape: f32[160,32], index: 2, kind: input, shape index: {}]
  %s3 = inlined_call_operand.vmem [shape: f32[128,1], index: 3, kind: input, shape index: {}]
  %s4 = inlined_call_operand.vmem [shape: f32[256,256], index: 4, kind: input, shape index: {}]
  %s5 = inlined_call_operand.vmem [shape: f32[2,32,256], index: 5, kind: output, shape index: {}]
  %s6 = sld [smem:[#allocation0]]
  $region53: #{fully_connect_gc_layer.1} parent=0
    _
  %s8 = ssub.s32 1, %s6
  %s9 = scalar_select 0, %s8, %s6
  loop: start=0, step=1, limit=4
  $region2: #{fully_connect_gc_layer.1} parent=0 // loop_pre_header
    _
  $region3: #{fully_connect_gc_layer.1} parent=0 // loop_header
    %s11 = sphi 0, %s15
    %p12 = scmp.ge.s32.totalorder %s11, 4
    %s21 = sphi 0, %s23
    %s24 = sphi 0, %s21
    %s25 = sphi 0, %s24
    %s41 = sphi 0, %s25
    %s47 = sphi 0, %s49
    %s50 = sphi 0, %s47
    %s51 = sphi 0, %s50
    %s67 = sphi 0, %s51
    %s71 = sphi 0, %s71
    %s73 = sphi 0, %s71
    %s74 = sphi 0, %s73
    %s88 = sphi 0, %s74
    %s92 = sphi 0, %s92
    %s94 = sphi 0, %s92
    %s95 = sphi 0, %s94
    %s109 = sphi 0, %s95
    %s113 = sphi 0, %s113
    %s115 = sphi 0, %s113
    %s116 = sphi 0, %s115
    %s130 = sphi 0, %s116
    %s136 = sphi 0, %s138
    %s139 = sphi 0, %s136
    %s140 = sphi 0, %s139
    %s156 = sphi 0, %s140
  $region4: #{fully_connect_gc_layer.1} parent=0 // loop_header_branch
    %14 = sbr.rel (%p12) target = $region8
  $region5: #{fully_connect_gc_layer.1} parent=0 // loop_body
    %s16 = ssub.s32 %s11, 1
    %s17 = ssub.s32 %s11, 2
    %s18 = sadd.s32 %s11, 1
    %s19 = ssub.s32 %s11, %s18
    %p20 = scmp.eq.s32.totalorder %s19, 0
    %s22 = sadd.s32 %s21, 1
    %s23 = scalar_select %p20, %s21, %s22
    %p26 = pneg %p20
    %p27 = scmp.eq.s32.totalorder %s11, 1
    %p28 = por %p26, %p27
    %p29 = scmp.ne.s32.totalorder %s21, %s24
    %p30 = scmp.eq.s32.totalorder %s11, 0
    %p31 = por %p29, %p30
    %p32 = scmp.ne.s32.totalorder %s21, %s24
    %p33 = scmp.eq.s32.totalorder %s16, 1
    %p34 = por %p32, %p33
    %p35 = scmp.ne.s32.totalorder %s24, %s25
    %p36 = scmp.eq.s32.totalorder %s16, 0
    %p37 = por %p35, %p36
    %p38 = scmp.ne.s32.totalorder %s24, %s25
    %p39 = scmp.eq.s32.totalorder %s17, 1
    %p40 = por %p38, %p39
    %p42 = scmp.ne.s32.totalorder %s25, %s41
    %p43 = scmp.eq.s32.totalorder %s17, 0
    %p44 = por %p42, %p43
    %s45 = ssub.s32 %s11, %s18
    %p46 = scmp.eq.s32.totalorder %s45, 0
    %s48 = sadd.s32 %s47, 1
    %s49 = scalar_select %p46, %s47, %s48
    %p52 = pneg %p46
    %p53 = scmp.eq.s32.totalorder %s11, 1
    %p54 = por %p52, %p53
    %p55 = scmp.ne.s32.totalorder %s47, %s50
    %p56 = scmp.eq.s32.totalorder %s11, 0
    %p57 = por %p55, %p56
    %p58 = scmp.ne.s32.totalorder %s47, %s50
    %p59 = scmp.eq.s32.totalorder %s16, 1
    %p60 = por %p58, %p59
    %p61 = scmp.ne.s32.totalorder %s50, %s51
    %p62 = scmp.eq.s32.totalorder %s16, 0
    %p63 = por %p61, %p62
    %p64 = scmp.ne.s32.totalorder %s50, %s51
    %p65 = scmp.eq.s32.totalorder %s17, 1
    %p66 = por %p64, %p65
    %p68 = scmp.ne.s32.totalorder %s51, %s67
    %p69 = scmp.eq.s32.totalorder %s17, 0
    %p70 = por %p68, %p69
    %s72 = sadd.s32 %s71, 1
    %p75 = scmp.eq.s32.totalorder %s11, 1
    %p76 = scmp.ne.s32.totalorder %s71, %s73
    %p77 = scmp.eq.s32.totalorder %s11, 0
    %p78 = por %p76, %p77
    %p79 = scmp.ne.s32.totalorder %s71, %s73
    %p80 = scmp.eq.s32.totalorder %s16, 1
    %p81 = por %p79, %p80
    %p82 = scmp.ne.s32.totalorder %s73, %s74
    %p83 = scmp.eq.s32.totalorder %s16, 0
    %p84 = por %p82, %p83
    %p85 = scmp.ne.s32.totalorder %s73, %s74
    %p86 = scmp.eq.s32.totalorder %s17, 1
    %p87 = por %p85, %p86
    %p89 = scmp.ne.s32.totalorder %s74, %s88
    %p90 = scmp.eq.s32.totalorder %s17, 0
    %p91 = por %p89, %p90
    %s93 = sadd.s32 %s92, 1
    %p96 = scmp.eq.s32.totalorder %s11, 1
    %p97 = scmp.ne.s32.totalorder %s92, %s94
    %p98 = scmp.eq.s32.totalorder %s11, 0
    %p99 = por %p97, %p98
    %p100 = scmp.ne.s32.totalorder %s92, %s94
    %p101 = scmp.eq.s32.totalorder %s16, 1
    %p102 = por %p100, %p101
    %p103 = scmp.ne.s32.totalorder %s94, %s95
    %p104 = scmp.eq.s32.totalorder %s16, 0
    %p105 = por %p103, %p104
    %p106 = scmp.ne.s32.totalorder %s94, %s95
    %p107 = scmp.eq.s32.totalorder %s17, 1
    %p108 = por %p106, %p107
    %p110 = scmp.ne.s32.totalorder %s95, %s109
    %p111 = scmp.eq.s32.totalorder %s17, 0
    %p112 = por %p110, %p111
    %s114 = sadd.s32 %s113, 1
    %p117 = scmp.eq.s32.totalorder %s11, 1
    %p118 = scmp.ne.s32.totalorder %s113, %s115
    %p119 = scmp.eq.s32.totalorder %s11, 0
    %p120 = por %p118, %p119
    %p121 = scmp.ne.s32.totalorder %s113, %s115
    %p122 = scmp.eq.s32.totalorder %s16, 1
    %p123 = por %p121, %p122
    %p124 = scmp.ne.s32.totalorder %s115, %s116
    %p125 = scmp.eq.s32.totalorder %s16, 0
    %p126 = por %p124, %p125
    %p127 = scmp.ne.s32.totalorder %s115, %s116
    %p128 = scmp.eq.s32.totalorder %s17, 1
    %p129 = por %p127, %p128
    %p131 = scmp.ne.s32.totalorder %s116, %s130
    %p132 = scmp.eq.s32.totalorder %s17, 0
    %p133 = por %p131, %p132
    %s134 = ssub.s32 %s11, %s18
    %p135 = scmp.eq.s32.totalorder %s134, 0
    %s137 = sadd.s32 %s136, 1
    %s138 = scalar_select %p135, %s136, %s137
    %p141 = pneg %p135
    %p142 = scmp.eq.s32.totalorder %s11, 1
    %p143 = por %p141, %p142
    %p144 = scmp.ne.s32.totalorder %s136, %s139
    %p145 = scmp.eq.s32.totalorder %s11, 0
    %p146 = por %p144, %p145
    %p147 = scmp.ne.s32.totalorder %s136, %s139
    %p148 = scmp.eq.s32.totalorder %s16, 1
    %p149 = por %p147, %p148
    %p150 = scmp.ne.s32.totalorder %s139, %s140
    %p151 = scmp.eq.s32.totalorder %s16, 0
    %p152 = por %p150, %p151
    %p153 = scmp.ne.s32.totalorder %s139, %s140
    %p154 = scmp.eq.s32.totalorder %s17, 1
    %p155 = por %p153, %p154
    %p157 = scmp.ne.s32.totalorder %s140, %s156
    %p158 = scmp.eq.s32.totalorder %s17, 0
    %p159 = por %p157, %p158
    %p160 = scmp.le.s32.totalorder 1, %s11
    %p161 = scmp.lt.s32.totalorder %s11, 3
    %p162 = pnand %p160, %p161
    %p163 = pneg %p162
    // Predicated region
    $region9: #{fully_connect_gc_layer.1} parent=5 // pred_check
      _
    $region10: #{fully_connect_gc_layer.1} parent=5 // pred_check_branch
      %165 = sbr.rel (%p162) target = $region12
    $region11: #{fully_connect_gc_layer.1} parent=5 // pred_region
      %s166 = ssub.s32 %s11, 1
      // Predicated region
      $region13: #{fully_connect_gc_layer.1} parent=11 // pred_check
        %p167 = pneg %p84
      $region14: #{fully_connect_gc_layer.1} parent=11 // pred_check_branch
        %169 = sbr.rel (%p167) target = $region16
      $region15: #{fully_connect_gc_layer.1} parent=11 // pred_region
        _
      $region16: #{fully_connect_gc_layer.1} parent=11 // pred_fallthru
        _
      // Predicated region
      $region17: #{fully_connect_gc_layer.1} parent=11 // pred_check
        %p170 = pneg %p105
      $region18: #{fully_connect_gc_layer.1} parent=11 // pred_check_branch
        %172 = sbr.rel (%p170) target = $region20
      $region19: #{fully_connect_gc_layer.1} parent=11 // pred_region
        _
      $region20: #{fully_connect_gc_layer.1} parent=11 // pred_fallthru
        _
      // Predicated region
      $region21: #{fully_connect_gc_layer.1} parent=11 // pred_check
        %p173 = pneg %p126
      $region22: #{fully_connect_gc_layer.1} parent=11 // pred_check_branch
        %175 = sbr.rel (%p173) target = $region24
      $region23: #{fully_connect_gc_layer.1} parent=11 // pred_region
        _
      $region24: #{fully_connect_gc_layer.1} parent=11 // pred_fallthru
        _
    $region12: #{fully_connect_gc_layer.1} parent=5 // pred_fallthru
      _
    %p176 = scmp.lt.s32.totalorder %s11, 2
    // Predicated region
    $region25: #{fully_connect_gc_layer.1} parent=5 // pred_check
      %p177 = pneg %p176
    $region26: #{fully_connect_gc_layer.1} parent=5 // pred_check_branch
      %179 = sbr.rel (%p177) target = $region28
    $region27: #{fully_connect_gc_layer.1} parent=5 // pred_region
      // Predicated region
      $region29: #{fully_connect_gc_layer.1} parent=27 // pred_check
        %p180 = pneg %p31
      $region30: #{fully_connect_gc_layer.1} parent=27 // pred_check_branch
        %182 = sbr.rel (%p180) target = $region32
      $region31: #{fully_connect_gc_layer.1} parent=27 // pred_region
        %p183 = scmp.lt.s32.totalorder %s11, 1
        %s184 = scalar_select %p183, %s11, 1
        %s185 = smul.addr %s184, 8
        %s186 = smul.addr %s185, 8
        %s187 = scalar_lea.vmem %s0, %s186
      $region32: #{fully_connect_gc_layer.1} parent=27 // pred_fallthru
        _
      // Predicated region
      $region33: #{fully_connect_gc_layer.1} parent=27 // pred_check
        %p188 = pneg %p57
      $region34: #{fully_connect_gc_layer.1} parent=27 // pred_check_branch
        %190 = sbr.rel (%p188) target = $region36
      $region35: #{fully_connect_gc_layer.1} parent=27 // pred_region
        %p191 = scmp.lt.s32.totalorder %s11, 1
        %s192 = scalar_select %p191, %s11, 1
        %s193 = smul.addr %s192, 32
        %s194 = smul.addr %s193, 8
        %s195 = scalar_lea.vmem %s1, %s194
      $region36: #{fully_connect_gc_layer.1} parent=27 // pred_fallthru
        _
    $region28: #{fully_connect_gc_layer.1} parent=5 // pred_fallthru
      _
    %p196 = scmp.le.s32.totalorder 1, %s11
    %p197 = scmp.lt.s32.totalorder %s11, 3
    %p198 = pnand %p196, %p197
    %p199 = pneg %p198
    // Predicated region
    $region37: #{fully_connect_gc_layer.1} parent=5 // pred_check
      _
    $region38: #{fully_connect_gc_layer.1} parent=5 // pred_check_branch
      %201 = sbr.rel (%p198) target = $region40
    $region39: #{fully_connect_gc_layer.1} parent=5 // pred_region
      %s202 = ssub.s32 %s11, 1
      %p203 = scmp.lt.s32.totalorder %s16, 1
      %s204 = scalar_select %p203, %s16, 1
      %s205 = smul.addr %s204, 8
      %s206 = smul.addr %s205, 8
      %s207 = scalar_lea.vmem %s0, %s206
      %p208 = pneg %p37
      %p209 = pneg %p34
      %p210 = scmp.lt.s32.totalorder %s16, 1
      %s211 = scalar_select %p210, %s16, 1
      %s212 = smul.addr %s211, 32
      %s213 = smul.addr %s212, 8
      %s214 = scalar_lea.vmem %s1, %s213
      %p215 = pneg %p63
      %p216 = pneg %p60
      %p217 = pneg %p84
      %p218 = pneg %p81
      %p219 = pneg %p105
      %p220 = pneg %p102
      %p221 = pneg %p126
      %p222 = pneg %p123
      %p223 = pneg %p152
      %p224 = pneg %p149
      %p225 = scmp.lt.s32.totalorder %s16, 1
      %s226 = scalar_select %p225, %s16, 1
      %s227 = smul.addr %s226, 8
      %s228 = smul.addr %s227, 8
      %s229 = scalar_lea.vmem %s5, %s228
      %p230 = scmp.lt.s32.totalorder %s16, 1
      %s231 = scalar_select %p230, %s16, 1
      %s232 = smul.addr %s231, 8
      %s233 = smul.addr %s232, 8
      %s234 = scalar_lea.vmem %s0, %s233
      %p235 = scmp.lt.s32.totalorder %s16, 1
      %s236 = scalar_select %p235, %s16, 1
      %s237 = smul.addr %s236, 32
      %s238 = smul.addr %s237, 8
      %s239 = scalar_lea.vmem %s1, %s238
      %p240 = scmp.lt.s32.totalorder %s16, 1
      %s241 = scalar_select %p240, %s16, 1
      %s242 = smul.addr %s241, 8
      %s243 = smul.addr %s242, 8
      %s244 = scalar_lea.vmem %s5, %s243
      %v245 = vld [vmem:[%s234] sm:$0xff]
      %v246 = vld [vmem:[%s234 + $0x8] sm:$0xff]
      %v247 = vld [vmem:[%s234 + $0x10] sm:$0xff]
      %v248 = vld [vmem:[%s234 + $0x18] sm:$0xff]
      %v249 = vld [vmem:[%s234 + $0x20] sm:$0xff]
      %v250 = vld [vmem:[%s234 + $0x28] sm:$0xff]
      %v251 = vld [vmem:[%s234 + $0x30] sm:$0xff]
      %v252 = vld [vmem:[%s234 + $0x38] sm:$0xff]
      %v253 = vld [vmem:[%s239] sm:$0xff]
      %v254 = vld [vmem:[%s239 + $0x8] sm:$0xff]
      %v255 = vld [vmem:[%s239 + $0x10] sm:$0xff]
      %v256 = vld [vmem:[%s239 + $0x18] sm:$0xff]
      %v257 = vld [vmem:[%s239 + $0x20] sm:$0xff]
      %v258 = vld [vmem:[%s239 + $0x28] sm:$0xff]
      %v259 = vld [vmem:[%s239 + $0x30] sm:$0xff]
      %v260 = vld [vmem:[%s239 + $0x38] sm:$0xff]
      %v261 = vld [vmem:[%s239 + $0x40] sm:$0xff]
      %v262 = vld [vmem:[%s239 + $0x48] sm:$0xff]
      %v263 = vld [vmem:[%s239 + $0x50] sm:$0xff]
      %v264 = vld [vmem:[%s239 + $0x58] sm:$0xff]
      %v265 = vld [vmem:[%s239 + $0x60] sm:$0xff]
      %v266 = vld [vmem:[%s239 + $0x68] sm:$0xff]
      %v267 = vld [vmem:[%s239 + $0x70] sm:$0xff]
      %v268 = vld [vmem:[%s239 + $0x78] sm:$0xff]
      %v269 = vld [vmem:[%s239 + $0x80] sm:$0xff]
      %v270 = vld [vmem:[%s239 + $0x88] sm:$0xff]
      %v271 = vld [vmem:[%s239 + $0x90] sm:$0xff]
      %v272 = vld [vmem:[%s239 + $0x98] sm:$0xff]
      %v273 = vld [vmem:[%s239 + $0xa0] sm:$0xff]
      %v274 = vld [vmem:[%s239 + $0xa8] sm:$0xff]
      %v275 = vld [vmem:[%s239 + $0xb0] sm:$0xff]
      %v276 = vld [vmem:[%s239 + $0xb8] sm:$0xff]
      %v277 = vld [vmem:[%s239 + $0xc0] sm:$0xff]
      %v278 = vld [vmem:[%s239 + $0xc8] sm:$0xff]
      %v279 = vld [vmem:[%s239 + $0xd0] sm:$0xff]
      %v280 = vld [vmem:[%s239 + $0xd8] sm:$0xff]
      %v281 = vld [vmem:[%s239 + $0xe0] sm:$0xff]
      %v282 = vld [vmem:[%s239 + $0xe8] sm:$0xff]
      %v283 = vld [vmem:[%s239 + $0xf0] sm:$0xff]
      %v284 = vld [vmem:[%s239 + $0xf8] sm:$0xff]
      %v285 = vld [vmem:[%s2] sm:$0xff]
      %v286 = vld [vmem:[%s2 + $0x8] sm:$0xff]
      %v287 = vld [vmem:[%s2 + $0x10] sm:$0xff]
      %v288 = vld [vmem:[%s2 + $0x18] sm:$0xff]
      %v289 = vld [vmem:[%s2 + $0x20] sm:$0xff]
      %v290 = vld [vmem:[%s2 + $0x28] sm:$0xff]
      %v291 = vld [vmem:[%s2 + $0x30] sm:$0xff]
      %v292 = vld [vmem:[%s2 + $0x38] sm:$0xff]
      %v293 = vld [vmem:[%s2 + $0x40] sm:$0xff]
      %v294 = vld [vmem:[%s2 + $0x48] sm:$0xff]
      %v295 = vld [vmem:[%s2 + $0x50] sm:$0xff]
      %v296 = vld [vmem:[%s2 + $0x58] sm:$0xff]
      %v297 = vld [vmem:[%s2 + $0x60] sm:$0xff]
      %v298 = vld [vmem:[%s2 + $0x68] sm:$0xff]
      %v299 = vld [vmem:[%s2 + $0x70] sm:$0xff]
      %v300 = vld [vmem:[%s2 + $0x78] sm:$0xff]
      %v301 = vld [vmem:[%s2 + $0x80] sm:$0xff]
      %v302 = vld [vmem:[%s2 + $0x88] sm:$0xff]
      %v303 = vld [vmem:[%s2 + $0x90] sm:$0xff]
      %v304 = vld [vmem:[%s2 + $0x98] sm:$0xff]
      %vm305 = vcmask 261120
      %v307 = vsel %vm305, %v285, 0
      %v310 = vsel %vm305, %v286, 0
      %v313 = vsel %vm305, %v287, 0
      %v316 = vsel %vm305, %v288, 0
      %v319 = vsel %vm305, %v289, 0
      %v322 = vsel %vm305, %v290, 0
      %v325 = vsel %vm305, %v291, 0
      %v328 = vsel %vm305, %v292, 0
      %v331 = vsel %vm305, %v293, 0
      %v334 = vsel %vm305, %v294, 0
      %v337 = vsel %vm305, %v295, 0
      %v340 = vsel %vm305, %v296, 0
      %v343 = vsel %vm305, %v297, 0
      %v346 = vsel %vm305, %v298, 0
      %v349 = vsel %vm305, %v299, 0
      %v352 = vsel %vm305, %v300, 0
      %v355 = vsel %vm305, %v301, 0
      %v358 = vsel %vm305, %v302, 0
      %v361 = vsel %vm305, %v303, 0
      %v364 = vsel %vm305, %v304, 0
      %366 = vmatprep.subr.mxu0 %v246
      %367 = vmatpush1.msra.mxu0 %v245
      %368 = vmatprep.subr.mxu0 %v248
      %369 = vmatpush1.msra.mxu0 %v247
      %370 = vmatprep.subr.mxu0 %v250
      %371 = vmatpush1.msra.mxu0 %v249
      %372 = vmatprep.subr.mxu0 %v252
      %373 = vmatpush1.msra.mxu0 %v251
      %374 = vmatprep.subr.mxu0 0.0
      %375 = vmatpush1.msra.mxu0 0.0
      %376 = vmatprep.subr.mxu0 0.0
      %377 = vmatpush1.msra.mxu0 0.0
      %378 = vmatprep.subr.mxu0 0.0
      %379 = vmatpush1.msra.mxu0 0.0
      %380 = vmatprep.subr.mxu0 0.0
      %381 = vmatpush1.msra.mxu0 0.0
      %382 = vmatprep.subr.mxu0 0.0
      %383 = vmatpush1.msra.mxu0 0.0
      %384 = vmatprep.subr.mxu0 0.0
      %385 = vmatpush1.msra.mxu0 0.0
      %386 = vmatprep.subr.mxu0 0.0
      %387 = vmatpush1.msra.mxu0 0.0
      %388 = vmatprep.subr.mxu0 0.0
      %389 = vmatpush1.msra.mxu0 0.0
      %390 = vmatprep.subr.mxu0 0.0
      %391 = vmatpush1.msra.mxu0 0.0
      %392 = vmatprep.subr.mxu0 0.0
      %393 = vmatpush1.msra.mxu0 0.0
      %394 = vmatprep.subr.mxu0 0.0
      %395 = vmatpush1.msra.mxu0 0.0
      %396 = vmatprep.subr.mxu0 0.0
      %397 = vmatpush1.msra.mxu0 0.0
      %398 = vmatprep.subr.mxu0 0.0
      %399 = vmatpush1.msra.mxu0 0.0
      %400 = vmatprep.subr.mxu0 0.0
      %401 = vmatpush1.msra.mxu0 0.0
      %402 = vmatprep.subr.mxu0 0.0
      %403 = vmatpush1.msra.mxu0 0.0
      %404 = vmatprep.subr.mxu0 0.0
      %405 = vmatpush1.msra.mxu0 0.0
      %406 = vmatprep.subr.mxu0 0.0
      %407 = vmatpush1.msra.mxu0 0.0
      %408 = vmatprep.subr.mxu0 0.0
      %409 = vmatpush1.msra.mxu0 0.0
      %410 = vmatprep.subr.mxu0 0.0
      %411 = vmatpush1.msra.mxu0 0.0
      %412 = vmatprep.subr.mxu0 0.0
      %413 = vmatpush1.msra.mxu0 0.0
      %414 = vmatprep.subr.mxu0 0.0
      %415 = vmatpush1.msra.mxu0 0.0
      %416 = vmatprep.subr.mxu0 0.0
      %417 = vmatpush1.msra.mxu0 0.0
      %418 = vmatprep.subr.mxu0 0.0
      %419 = vmatpush1.msra.mxu0 0.0
      %420 = vmatprep.subr.mxu0 0.0
      %421 = vmatpush1.msra.mxu0 0.0
      %422 = vmatprep.subr.mxu0 0.0
      %423 = vmatpush1.msra.mxu0 0.0
      %424 = vmatprep.subr.mxu0 0.0
      %425 = vmatpush1.msra.mxu0 0.0
      %426 = vmatprep.subr.mxu0 0.0
      %427 = vmatpush1.msra.mxu0 0.0
      %428 = vmatprep.subr.mxu0 0.0
      %429 = vmatpush1.msra.mxu0 0.0
      %430 = vmatprep.mubr.f32.mxu0 0.0
      %431 = vmatmul.mubr.f32.gmra.mrb[0].mxu0 %v307
      %v432 = vpop.f32.mrb[0].mxu0
      %v433 = vadd.f32 0.0, %v432
      %v434 = vpop.f32.mrb[0].mxu0
      %v435 = vadd.f32 0.0, %v434
      %436 = vmatprep.mubr.f32.mxu0 0.0
      %437 = vmatmul.mubr.f32.gmra.mrb[0].mxu0 %v310
      %v438 = vpop.f32.mrb[0].mxu0
      %v439 = vadd.f32 0.0, %v438
      %v440 = vpop.f32.mrb[0].mxu0
      %v441 = vadd.f32 0.0, %v440
      %442 = vmatprep.mubr.f32.mxu0 0.0
      %443 = vmatmul.mubr.f32.gmra.mrb[0].mxu0 %v313
      %v444 = vpop.f32.mrb[0].mxu0
      %v445 = vadd.f32 0.0, %v444
      %v446 = vpop.f32.mrb[0].mxu0
      %v447 = vadd.f32 0.0, %v446
      %448 = vmatprep.mubr.f32.mxu0 0.0
      %449 = vmatmul.mubr.f32.gmra.mrb[0].mxu0 %v316
      %v450 = vpop.f32.mrb[0].mxu0
      %v451 = vadd.f32 0.0, %v450
      %v452 = vpop.f32.mrb[0].mxu0
      %v453 = vadd.f32 0.0, %v452
      %454 = vmatprep.mubr.f32.mxu0 0.0
      %455 = vmatmul.mubr.f32.gmra.mrb[0].mxu0 %v319
      %v456 = vpop.f32.mrb[0].mxu0
      %v457 = vadd.f32 0.0, %v456
      %v458 = vpop.f32.mrb[0].mxu0
      %v459 = vadd.f32 0.0, %v458
      %460 = vmatprep.mubr.f32.mxu0 0.0
      %461 = vmatmul.mubr.f32.gmra.mrb[0].mxu0 %v322
      %v462 = vpop.f32.mrb[0].mxu0
      %v463 = vadd.f32 0.0, %v462
      %v464 = vpop.f32.mrb[0].mxu0
      %v465 = vadd.f32 0.0, %v464
      %466 = vmatprep.mubr.f32.mxu0 0.0
      %467 = vmatmul.mubr.f32.gmra.mrb[0].mxu0 %v325
      %v468 = vpop.f32.mrb[0].mxu0
      %v469 = vadd.f32 0.0, %v468
      %v470 = vpop.f32.mrb[0].mxu0
      %v471 = vadd.f32 0.0, %v470
      %472 = vmatprep.mubr.f32.mxu0 0.0
      %473 = vmatmul.mubr.f32.gmra.mrb[0].mxu0 %v328
      %v474 = vpop.f32.mrb[0].mxu0
      %v475 = vadd.f32 0.0, %v474
      %v476 = vpop.f32.mrb[0].mxu0
      %v477 = vadd.f32 0.0, %v476
      %478 = vmatprep.mubr.f32.mxu0 0.0
      %479 = vmatmul.mubr.f32.gmra.mrb[0].mxu0 %v331
      %v480 = vpop.f32.mrb[0].mxu0
      %v481 = vadd.f32 0.0, %v480
      %v482 = vpop.f32.mrb[0].mxu0
      %v483 = vadd.f32 0.0, %v482
      %484 = vmatprep.mubr.f32.mxu0 0.0
      %485 = vmatmul.mubr.f32.gmra.mrb[0].mxu0 %v334
      %v486 = vpop.f32.mrb[0].mxu0
      %v487 = vadd.f32 0.0, %v486
      %v488 = vpop.f32.mrb[0].mxu0
      %v489 = vadd.f32 0.0, %v488
      %490 = vmatprep.mubr.f32.mxu0 0.0
      %491 = vmatmul.mubr.f32.gmra.mrb[0].mxu0 %v337
      %v492 = vpop.f32.mrb[0].mxu0
      %v493 = vadd.f32 0.0, %v492
      %v494 = vpop.f32.mrb[0].mxu0
      %v495 = vadd.f32 0.0, %v494
      %496 = vmatprep.mubr.f32.mxu0 0.0
      %497 = vmatmul.mubr.f32.gmra.mrb[0].mxu0 %v340
      %v498 = vpop.f32.mrb[0].mxu0
      %v499 = vadd.f32 0.0, %v498
      %v500 = vpop.f32.mrb[0].mxu0
      %v501 = vadd.f32 0.0, %v500
      %502 = vmatprep.mubr.f32.mxu0 0.0
      %503 = vmatmul.mubr.f32.gmra.mrb[0].mxu0 %v343
      %v504 = vpop.f32.mrb[0].mxu0
      %v505 = vadd.f32 0.0, %v504
      %v506 = vpop.f32.mrb[0].mxu0
      %v507 = vadd.f32 0.0, %v506
      %508 = vmatprep.mubr.f32.mxu0 0.0
      %509 = vmatmul.mubr.f32.gmra.mrb[0].mxu0 %v346
      %v510 = vpop.f32.mrb[0].mxu0
      %v511 = vadd.f32 0.0, %v510
      %v512 = vpop.f32.mrb[0].mxu0
      %v513 = vadd.f32 0.0, %v512
      %514 = vmatprep.mubr.f32.mxu0 0.0
      %515 = vmatmul.mubr.f32.gmra.mrb[0].mxu0 %v349
      %v516 = vpop.f32.mrb[0].mxu0
      %v517 = vadd.f32 0.0, %v516
      %v518 = vpop.f32.mrb[0].mxu0
      %v519 = vadd.f32 0.0, %v518
      %520 = vmatprep.mubr.f32.mxu0 0.0
      %521 = vmatmul.mubr.f32.gmra.mrb[0].mxu0 %v352
      %v522 = vpop.f32.mrb[0].mxu0
      %v523 = vadd.f32 0.0, %v522
      %v524 = vpop.f32.mrb[0].mxu0
      %v525 = vadd.f32 0.0, %v524
      %526 = vmatprep.mubr.f32.mxu0 0.0
      %527 = vmatmul.mubr.f32.gmra.mrb[0].mxu0 %v355
      %v528 = vpop.f32.mrb[0].mxu0
      %v529 = vadd.f32 0.0, %v528
      %v530 = vpop.f32.mrb[0].mxu0
      %v531 = vadd.f32 0.0, %v530
      %532 = vmatprep.mubr.f32.mxu0 0.0
      %533 = vmatmul.mubr.f32.gmra.mrb[0].mxu0 %v358
      %v534 = vpop.f32.mrb[0].mxu0
      %v535 = vadd.f32 0.0, %v534
      %v536 = vpop.f32.mrb[0].mxu0
      %v537 = vadd.f32 0.0, %v536
      %538 = vmatprep.mubr.f32.mxu0 0.0
      %539 = vmatmul.mubr.f32.gmra.mrb[0].mxu0 %v361
      %v540 = vpop.f32.mrb[0].mxu0
      %v541 = vadd.f32 0.0, %v540
      %v542 = vpop.f32.mrb[0].mxu0
      %v543 = vadd.f32 0.0, %v542
      %544 = vmatprep.mubr.f32.mxu0 0.0
      %545 = vmatmul.mubr.f32.gmra.mrb[0].mxu0 %v364
      %v546 = vpop.f32.mrb[0].mxu0
      %v547 = vadd.f32 0.0, %v546
      %v548 = vpop.f32.mrb[0].mxu0
      %v549 = vadd.f32 0.0, %v548
      %550 = vdwg.mxu0
      %v551 = vld [vmem:[%s3] sm:$0xff]
      %v552 = vld [vmem:[%s3 + $0x8] sm:$0xff]
      %v553 = vld [vmem:[%s3 + $0x10] sm:$0xff]
      %v554 = vld [vmem:[%s3 + $0x18] sm:$0xff]
      %v555 = vld [vmem:[%s3 + $0x20] sm:$0xff]
      %v556 = vld [vmem:[%s3 + $0x28] sm:$0xff]
      %v557 = vld [vmem:[%s3 + $0x30] sm:$0xff]
      %v558 = vld [vmem:[%s3 + $0x38] sm:$0xff]
      %v559 = vld [vmem:[%s3 + $0x40] sm:$0xff]
      %v560 = vld [vmem:[%s3 + $0x48] sm:$0xff]
      %v561 = vld [vmem:[%s3 + $0x50] sm:$0xff]
      %v562 = vld [vmem:[%s3 + $0x58] sm:$0xff]
      %v563 = vld [vmem:[%s3 + $0x60] sm:$0xff]
      %v564 = vld [vmem:[%s3 + $0x68] sm:$0xff]
      %v565 = vld [vmem:[%s3 + $0x70] sm:$0xff]
      %v566 = vld [vmem:[%s3 + $0x78] sm:$0xff]
      %568 = vset.pattern.permute.xlu0 0
      %569 = vperm.xlu0 %568, %v551
      %v570 = vpop.permute.xlu0 %569
      %573 = vset.pattern.permute.xlu0 0
      %574 = vperm.xlu0 %573, %v552
      %v575 = vpop.permute.xlu0 %574
      %578 = vset.pattern.permute.xlu0 0
      %579 = vperm.xlu0 %578, %v553
      %v580 = vpop.permute.xlu0 %579
      %583 = vset.pattern.permute.xlu0 0
      %584 = vperm.xlu0 %583, %v554
      %v585 = vpop.permute.xlu0 %584
      %588 = vset.pattern.permute.xlu0 0
      %589 = vperm.xlu0 %588, %v555
      %v590 = vpop.permute.xlu0 %589
      %593 = vset.pattern.permute.xlu0 0
      %594 = vperm.xlu0 %593, %v556
      %v595 = vpop.permute.xlu0 %594
      %598 = vset.pattern.permute.xlu0 0
      %599 = vperm.xlu0 %598, %v557
      %v600 = vpop.permute.xlu0 %599
      %603 = vset.pattern.permute.xlu0 0
      %604 = vperm.xlu0 %603, %v558
      %v605 = vpop.permute.xlu0 %604
      %608 = vset.pattern.permute.xlu0 0
      %609 = vperm.xlu0 %608, %v559
      %v610 = vpop.permute.xlu0 %609
      %613 = vset.pattern.permute.xlu0 0
      %614 = vperm.xlu0 %613, %v560
      %v615 = vpop.permute.xlu0 %614
      %618 = vset.pattern.permute.xlu0 0
      %619 = vperm.xlu0 %618, %v561
      %v620 = vpop.permute.xlu0 %619
      %623 = vset.pattern.permute.xlu0 0
      %624 = vperm.xlu0 %623, %v562
      %v625 = vpop.permute.xlu0 %624
      %628 = vset.pattern.permute.xlu0 0
      %629 = vperm.xlu0 %628, %v563
      %v630 = vpop.permute.xlu0 %629
      %633 = vset.pattern.permute.xlu0 0
      %634 = vperm.xlu0 %633, %v564
      %v635 = vpop.permute.xlu0 %634
      %638 = vset.pattern.permute.xlu0 0
      %639 = vperm.xlu0 %638, %v565
      %v640 = vpop.permute.xlu0 %639
      %643 = vset.pattern.permute.xlu0 0
      %644 = vperm.xlu0 %643, %v566
      %v645 = vpop.permute.xlu0 %644
      %v647 = vadd.f32 %v433, %v570
      %v648 = vadd.f32 %v435, %v570
      %v649 = vadd.f32 %v439, %v575
      %v650 = vadd.f32 %v441, %v575
      %v651 = vadd.f32 %v445, %v580
      %v652 = vadd.f32 %v447, %v580
      %v653 = vadd.f32 %v451, %v585
      %v654 = vadd.f32 %v453, %v585
      %v655 = vadd.f32 %v457, %v590
      %v656 = vadd.f32 %v459, %v590
      %v657 = vadd.f32 %v463, %v595
      %v658 = vadd.f32 %v465, %v595
      %v659 = vadd.f32 %v469, %v600
      %v660 = vadd.f32 %v471, %v600
      %v661 = vadd.f32 %v475, %v605
      %v662 = vadd.f32 %v477, %v605
      %v663 = vadd.f32 %v481, %v610
      %v664 = vadd.f32 %v483, %v610
      %v665 = vadd.f32 %v487, %v615
      %v666 = vadd.f32 %v489, %v615
      %v667 = vadd.f32 %v493, %v620
      %v668 = vadd.f32 %v495, %v620
      %v669 = vadd.f32 %v499, %v625
      %v670 = vadd.f32 %v501, %v625
      %v671 = vadd.f32 %v505, %v630
      %v672 = vadd.f32 %v507, %v630
      %v673 = vadd.f32 %v511, %v635
      %v674 = vadd.f32 %v513, %v635
      %v675 = vadd.f32 %v517, %v640
      %v676 = vadd.f32 %v519, %v640
      %v677 = vadd.f32 %v523, %v645
      %v678 = vadd.f32 %v525, %v645
      %v679 = vadd.f32 %v647, %v649
      %v680 = vadd.f32 %v679, %v651
      %v681 = vadd.f32 %v680, %v653
      %v682 = vadd.f32 %v681, %v655
      %v683 = vadd.f32 %v682, %v657
      %v684 = vadd.f32 %v683, %v659
      %v685 = vadd.f32 %v684, %v661
      %v686 = vadd.f32 %v685, %v663
      %v687 = vadd.f32 %v686, %v665
      %v688 = vadd.f32 %v687, %v667
      %v689 = vadd.f32 %v688, %v669
      %v690 = vadd.f32 %v689, %v671
      %v691 = vadd.f32 %v690, %v673
      %v692 = vadd.f32 %v691, %v675
      %v693 = vadd.f32 %v692, %v677
      %v694 = vrot.slane %v693, 4
      %v695 = vadd.f32 %v693, %v694
      %v696 = vrot.slane %v695, 2
      %v697 = vadd.f32 %v695, %v696
      %v698 = vrot.slane %v697, 1
      %v699 = vadd.f32 %v697, %v698
      %v700 = vadd.f32 %v648, %v650
      %v701 = vadd.f32 %v700, %v652
      %v702 = vadd.f32 %v701, %v654
      %v703 = vadd.f32 %v702, %v656
      %v704 = vadd.f32 %v703, %v658
      %v705 = vadd.f32 %v704, %v660
      %v706 = vadd.f32 %v705, %v662
      %v707 = vadd.f32 %v706, %v664
      %v708 = vadd.f32 %v707, %v666
      %v709 = vadd.f32 %v708, %v668
      %v710 = vadd.f32 %v709, %v670
      %v711 = vadd.f32 %v710, %v672
      %v712 = vadd.f32 %v711, %v674
      %v713 = vadd.f32 %v712, %v676
      %v714 = vadd.f32 %v713, %v678
      %v715 = vrot.slane %v714, 4
      %v716 = vadd.f32 %v714, %v715
      %v717 = vrot.slane %v716, 2
      %v718 = vadd.f32 %v716, %v717
      %v719 = vrot.slane %v718, 1
      %v720 = vadd.f32 %v718, %v719
      %v721 = vmul.f32 %v253, %v647
      %v722 = vmul.f32 %v254, %v648
      %v723 = vmul.f32 %v255, %v649
      %v724 = vmul.f32 %v256, %v650
      %v725 = vmul.f32 %v257, %v651
      %v726 = vmul.f32 %v258, %v652
      %v727 = vmul.f32 %v259, %v653
      %v728 = vmul.f32 %v260, %v654
      %v729 = vmul.f32 %v261, %v655
      %v730 = vmul.f32 %v262, %v656
      %v731 = vmul.f32 %v263, %v657
      %v732 = vmul.f32 %v264, %v658
      %v733 = vmul.f32 %v265, %v659
      %v734 = vmul.f32 %v266, %v660
      %v735 = vmul.f32 %v267, %v661
      %v736 = vmul.f32 %v268, %v662
      %v737 = vmul.f32 %v269, %v663
      %v738 = vmul.f32 %v270, %v664
      %v739 = vmul.f32 %v271, %v665
      %v740 = vmul.f32 %v272, %v666
      %v741 = vmul.f32 %v273, %v667
      %v742 = vmul.f32 %v274, %v668
      %v743 = vmul.f32 %v275, %v669
      %v744 = vmul.f32 %v276, %v670
      %v745 = vmul.f32 %v277, %v671
      %v746 = vmul.f32 %v278, %v672
      %v747 = vmul.f32 %v279, %v673
      %v748 = vmul.f32 %v280, %v674
      %v749 = vmul.f32 %v281, %v675
      %v750 = vmul.f32 %v282, %v676
      %v751 = vmul.f32 %v283, %v677
      %v752 = vmul.f32 %v284, %v678
      %v753 = vmul.f32 %v699, 0.5
      %v754 = vmul.f32 %v720, 0.5
      %v755 = vadd.f32 %v721, %v753
      %v756 = vadd.f32 %v722, %v754
      %v757 = vadd.f32 %v723, %v753
      %v758 = vadd.f32 %v724, %v754
      %v759 = vadd.f32 %v725, %v753
      %v760 = vadd.f32 %v726, %v754
      %v761 = vadd.f32 %v727, %v753
      %v762 = vadd.f32 %v728, %v754
      %v763 = vadd.f32 %v729, %v753
      %v764 = vadd.f32 %v730, %v754
      %v765 = vadd.f32 %v731, %v753
      %v766 = vadd.f32 %v732, %v754
      %v767 = vadd.f32 %v733, %v753
      %v768 = vadd.f32 %v734, %v754
      %v769 = vadd.f32 %v735, %v753
      %v770 = vadd.f32 %v736, %v754
      %v771 = vadd.f32 %v737, %v753
      %v772 = vadd.f32 %v738, %v754
      %v773 = vadd.f32 %v739, %v753
      %v774 = vadd.f32 %v740, %v754
      %v775 = vadd.f32 %v741, %v753
      %v776 = vadd.f32 %v742, %v754
      %v777 = vadd.f32 %v743, %v753
      %v778 = vadd.f32 %v744, %v754
      %v779 = vadd.f32 %v745, %v753
      %v780 = vadd.f32 %v746, %v754
      %v781 = vadd.f32 %v747, %v753
      %v782 = vadd.f32 %v748, %v754
      %v783 = vadd.f32 %v749, %v753
      %v784 = vadd.f32 %v750, %v754
      %v785 = vadd.f32 %v751, %v753
      %v786 = vadd.f32 %v752, %v754
      %787 = vxpose.xlu0.b32.start [1/16] %v647, 128
      %788 = vxpose.xlu0.b32.cont [2/16] %v649, 128
      %789 = vxpose.xlu0.b32.cont [3/16] %v651, 128
      %790 = vxpose.xlu0.b32.cont [4/16] %v653, 128
      %791 = vxpose.xlu0.b32.cont [5/16] %v655, 128
      %792 = vxpose.xlu0.b32.cont [6/16] %v657, 128
      %793 = vxpose.xlu0.b32.cont [7/16] %v659, 128
      %794 = vxpose.xlu0.b32.cont [8/16] %v661, 128
      %795 = vxpose.xlu0.b32.cont [9/16] %v663, 128
      %796 = vxpose.xlu0.b32.cont [10/16] %v665, 128
      %797 = vxpose.xlu0.b32.cont [11/16] %v667, 128
      %798 = vxpose.xlu0.b32.cont [12/16] %v669, 128
      %799 = vxpose.xlu0.b32.cont [13/16] %v671, 128
      %800 = vxpose.xlu0.b32.cont [14/16] %v673, 128
      %801 = vxpose.xlu0.b32.cont [15/16] %v675, 128
      %802 = vxpose.xlu0.b32.end [16/16] %v677, 128
      %v803 = vpop.trf.xlu0
      %v804 = vpop.trf.xlu0
      %v805 = vpop.trf.xlu0
      %v806 = vpop.trf.xlu0
      %v807 = vpop.trf.xlu0
      %v808 = vpop.trf.xlu0
      %v809 = vpop.trf.xlu0
      %v810 = vpop.trf.xlu0
      %v811 = vpop.trf.xlu0
      %v812 = vpop.trf.xlu0
      %v813 = vpop.trf.xlu0
      %v814 = vpop.trf.xlu0
      %v815 = vpop.trf.xlu0
      %v816 = vpop.trf.xlu0
      %v817 = vpop.trf.xlu0
      %v818 = vpop.trf.xlu0
      %819 = vxpose.xlu0.b32.start [1/16] %v648, 128
      %820 = vxpose.xlu0.b32.cont [2/16] %v650, 128
      %821 = vxpose.xlu0.b32.cont [3/16] %v652, 128
      %822 = vxpose.xlu0.b32.cont [4/16] %v654, 128
      %823 = vxpose.xlu0.b32.cont [5/16] %v656, 128
      %824 = vxpose.xlu0.b32.cont [6/16] %v658, 128
      %825 = vxpose.xlu0.b32.cont [7/16] %v660, 128
      %826 = vxpose.xlu0.b32.cont [8/16] %v662, 128
      %827 = vxpose.xlu0.b32.cont [9/16] %v664, 128
      %828 = vxpose.xlu0.b32.cont [10/16] %v666, 128
      %829 = vxpose.xlu0.b32.cont [11/16] %v668, 128
      %830 = vxpose.xlu0.b32.cont [12/16] %v670, 128
      %831 = vxpose.xlu0.b32.cont [13/16] %v672, 128
      %832 = vxpose.xlu0.b32.cont [14/16] %v674, 128
      %833 = vxpose.xlu0.b32.cont [15/16] %v676, 128
      %834 = vxpose.xlu0.b32.end [16/16] %v678, 128
      %v835 = vpop.trf.xlu0
      %v836 = vpop.trf.xlu0
      %v837 = vpop.trf.xlu0
      %v838 = vpop.trf.xlu0
      %v839 = vpop.trf.xlu0
      %v840 = vpop.trf.xlu0
      %v841 = vpop.trf.xlu0
      %v842 = vpop.trf.xlu0
      %v843 = vpop.trf.xlu0
      %v844 = vpop.trf.xlu0
      %v845 = vpop.trf.xlu0
      %v846 = vpop.trf.xlu0
      %v847 = vpop.trf.xlu0
      %v848 = vpop.trf.xlu0
      %v849 = vpop.trf.xlu0
      %v850 = vpop.trf.xlu0
      %851 = vmatprep.subr.mxu0 %v756
      %852 = vmatpush1.msra.mxu0 %v755
      %853 = vmatprep.subr.mxu0 %v758
      %854 = vmatpush1.msra.mxu0 %v757
      %855 = vmatprep.subr.mxu0 %v760
      %856 = vmatpush1.msra.mxu0 %v759
      %857 = vmatprep.subr.mxu0 %v762
      %858 = vmatpush1.msra.mxu0 %v761
      %859 = vmatprep.subr.mxu0 %v764
      %860 = vmatpush1.msra.mxu0 %v763
      %861 = vmatprep.subr.mxu0 %v766
      %862 = vmatpush1.msra.mxu0 %v765
      %863 = vmatprep.subr.mxu0 %v768
      %864 = vmatpush1.msra.mxu0 %v767
      %865 = vmatprep.subr.mxu0 %v770
      %866 = vmatpush1.msra.mxu0 %v769
      %867 = vmatprep.subr.mxu0 %v772
      %868 = vmatpush1.msra.mxu0 %v771
      %869 = vmatprep.subr.mxu0 %v774
      %870 = vmatpush1.msra.mxu0 %v773
      %871 = vmatprep.subr.mxu0 %v776
      %872 = vmatpush1.msra.mxu0 %v775
      %873 = vmatprep.subr.mxu0 %v778
      %874 = vmatpush1.msra.mxu0 %v777
      %875 = vmatprep.subr.mxu0 %v780
      %876 = vmatpush1.msra.mxu0 %v779
      %877 = vmatprep.subr.mxu0 %v782
      %878 = vmatpush1.msra.mxu0 %v781
      %879 = vmatprep.subr.mxu0 %v784
      %880 = vmatpush1.msra.mxu0 %v783
      %881 = vmatprep.subr.mxu0 %v786
      %882 = vmatpush1.msra.mxu0 %v785
      %883 = vmatprep.subr.mxu0 0.0
      %884 = vmatpush1.msra.mxu0 0.0
      %885 = vmatprep.subr.mxu0 0.0
      %886 = vmatpush1.msra.mxu0 0.0
      %887 = vmatprep.subr.mxu0 0.0
      %888 = vmatpush1.msra.mxu0 0.0
      %889 = vmatprep.subr.mxu0 0.0
      %890 = vmatpush1.msra.mxu0 0.0
      %891 = vmatprep.subr.mxu0 0.0
      %892 = vmatpush1.msra.mxu0 0.0
      %893 = vmatprep.subr.mxu0 0.0
      %894 = vmatpush1.msra.mxu0 0.0
      %895 = vmatprep.subr.mxu0 0.0
      %896 = vmatpush1.msra.mxu0 0.0
      %897 = vmatprep.subr.mxu0 0.0
      %898 = vmatpush1.msra.mxu0 0.0
      %899 = vmatprep.subr.mxu0 0.0
      %900 = vmatpush1.msra.mxu0 0.0
      %901 = vmatprep.subr.mxu0 0.0
      %902 = vmatpush1.msra.mxu0 0.0
      %903 = vmatprep.subr.mxu0 0.0
      %904 = vmatpush1.msra.mxu0 0.0
      %905 = vmatprep.subr.mxu0 0.0
      %906 = vmatpush1.msra.mxu0 0.0
      %907 = vmatprep.subr.mxu0 0.0
      %908 = vmatpush1.msra.mxu0 0.0
      %909 = vmatprep.subr.mxu0 0.0
      %910 = vmatpush1.msra.mxu0 0.0
      %911 = vmatprep.subr.mxu0 0.0
      %912 = vmatpush1.msra.mxu0 0.0
      %913 = vmatprep.subr.mxu0 0.0
      %914 = vmatpush1.msra.mxu0 0.0
      %915 = vmatprep.mubr.f32.mxu0 0.0
      %916 = vmatmul.mubr.f32.gmra.mrb[0].mxu0 %v803
      %v917 = vpop.f32.mrb[0].mxu0
      %v918 = vadd.f32 0.0, %v917
      %v919 = vpop.f32.mrb[0].mxu0
      %v920 = vadd.f32 0.0, %v919
      %921 = vmatprep.mubr.f32.mxu0 0.0
      %922 = vmatmul.mubr.f32.gmra.mrb[0].mxu0 %v804
      %v923 = vpop.f32.mrb[0].mxu0
      %v924 = vadd.f32 0.0, %v923
      %v925 = vpop.f32.mrb[0].mxu0
      %v926 = vadd.f32 0.0, %v925
      %927 = vmatprep.mubr.f32.mxu0 0.0
      %928 = vmatmul.mubr.f32.gmra.mrb[0].mxu0 %v805
      %v929 = vpop.f32.mrb[0].mxu0
      %v930 = vadd.f32 0.0, %v929
      %v931 = vpop.f32.mrb[0].mxu0
      %v932 = vadd.f32 0.0, %v931
      %933 = vmatprep.mubr.f32.mxu0 0.0
      %934 = vmatmul.mubr.f32.gmra.mrb[0].mxu0 %v806
      %v935 = vpop.f32.mrb[0].mxu0
      %v936 = vadd.f32 0.0, %v935
      %v937 = vpop.f32.mrb[0].mxu0
      %v938 = vadd.f32 0.0, %v937
      %939 = vmatprep.mubr.f32.mxu0 0.0
      %940 = vmatmul.mubr.f32.gmra.mrb[0].mxu0 %v807
      %v941 = vpop.f32.mrb[0].mxu0
      %v942 = vadd.f32 0.0, %v941
      %v943 = vpop.f32.mrb[0].mxu0
      %v944 = vadd.f32 0.0, %v943
      %945 = vmatprep.mubr.f32.mxu0 0.0
      %946 = vmatmul.mubr.f32.gmra.mrb[0].mxu0 %v808
      %v947 = vpop.f32.mrb[0].mxu0
      %v948 = vadd.f32 0.0, %v947
      %v949 = vpop.f32.mrb[0].mxu0
      %v950 = vadd.f32 0.0, %v949
      %951 = vmatprep.mubr.f32.mxu0 0.0
      %952 = vmatmul.mubr.f32.gmra.mrb[0].mxu0 %v809
      %v953 = vpop.f32.mrb[0].mxu0
      %v954 = vadd.f32 0.0, %v953
      %v955 = vpop.f32.mrb[0].mxu0
      %v956 = vadd.f32 0.0, %v955
      %957 = vmatprep.mubr.f32.mxu0 0.0
      %958 = vmatmul.mubr.f32.gmra.mrb[0].mxu0 %v810
      %v959 = vpop.f32.mrb[0].mxu0
      %v960 = vadd.f32 0.0, %v959
      %v961 = vpop.f32.mrb[0].mxu0
      %v962 = vadd.f32 0.0, %v961
      %963 = vmatprep.mubr.f32.mxu0 0.0
      %964 = vmatmul.mubr.f32.gmra.mrb[0].mxu0 %v811
      %v965 = vpop.f32.mrb[0].mxu0
      %v966 = vadd.f32 0.0, %v965
      %v967 = vpop.f32.mrb[0].mxu0
      %v968 = vadd.f32 0.0, %v967
      %969 = vmatprep.mubr.f32.mxu0 0.0
      %970 = vmatmul.mubr.f32.gmra.mrb[0].mxu0 %v812
      %v971 = vpop.f32.mrb[0].mxu0
      %v972 = vadd.f32 0.0, %v971
      %v973 = vpop.f32.mrb[0].mxu0
      %v974 = vadd.f32 0.0, %v973
      %975 = vmatprep.mubr.f32.mxu0 0.0
      %976 = vmatmul.mubr.f32.gmra.mrb[0].mxu0 %v813
      %v977 = vpop.f32.mrb[0].mxu0
      %v978 = vadd.f32 0.0, %v977
      %v979 = vpop.f32.mrb[0].mxu0
      %v980 = vadd.f32 0.0, %v979
      %981 = vmatprep.mubr.f32.mxu0 0.0
      %982 = vmatmul.mubr.f32.gmra.mrb[0].mxu0 %v814
      %v983 = vpop.f32.mrb[0].mxu0
      %v984 = vadd.f32 0.0, %v983
      %v985 = vpop.f32.mrb[0].mxu0
      %v986 = vadd.f32 0.0, %v985
      %987 = vmatprep.mubr.f32.mxu0 0.0
      %988 = vmatmul.mubr.f32.gmra.mrb[0].mxu0 %v815
      %v989 = vpop.f32.mrb[0].mxu0
      %v990 = vadd.f32 0.0, %v989
      %v991 = vpop.f32.mrb[0].mxu0
      %v992 = vadd.f32 0.0, %v991
      %993 = vmatprep.mubr.f32.mxu0 0.0
      %994 = vmatmul.mubr.f32.gmra.mrb[0].mxu0 %v816
      %v995 = vpop.f32.mrb[0].mxu0
      %v996 = vadd.f32 0.0, %v995
      %v997 = vpop.f32.mrb[0].mxu0
      %v998 = vadd.f32 0.0, %v997
      %999 = vmatprep.mubr.f32.mxu0 0.0
      %1000 = vmatmul.mubr.f32.gmra.mrb[0].mxu0 %v817
      %v1001 = vpop.f32.mrb[0].mxu0
      %v1002 = vadd.f32 0.0, %v1001
      %v1003 = vpop.f32.mrb[0].mxu0
      %v1004 = vadd.f32 0.0, %v1003
      %1005 = vmatprep.mubr.f32.mxu0 0.0
      %1006 = vmatmul.mubr.f32.gmra.mrb[0].mxu0 %v818
      %v1007 = vpop.f32.mrb[0].mxu0
      %v1008 = vadd.f32 0.0, %v1007
      %v1009 = vpop.f32.mrb[0].mxu0
      %v1010 = vadd.f32 0.0, %v1009
      %1011 = vmatprep.mubr.f32.mxu0 0.0
      %1012 = vmatmul.mubr.f32.gmra.mrb[0].mxu0 %v835
      %v1013 = vpop.f32.mrb[0].mxu0
      %v1014 = vadd.f32 0.0, %v1013
      %v1015 = vpop.f32.mrb[0].mxu0
      %v1016 = vadd.f32 0.0, %v1015
      %1017 = vmatprep.mubr.f32.mxu0 0.0
      %1018 = vmatmul.mubr.f32.gmra.mrb[0].mxu0 %v836
      %v1019 = vpop.f32.mrb[0].mxu0
      %v1020 = vadd.f32 0.0, %v1019
      %v1021 = vpop.f32.mrb[0].mxu0
      %v1022 = vadd.f32 0.0, %v1021
      %1023 = vmatprep.mubr.f32.mxu0 0.0
      %1024 = vmatmul.mubr.f32.gmra.mrb[0].mxu0 %v837
      %v1025 = vpop.f32.mrb[0].mxu0
      %v1026 = vadd.f32 0.0, %v1025
      %v1027 = vpop.f32.mrb[0].mxu0
      %v1028 = vadd.f32 0.0, %v1027
      %1029 = vmatprep.mubr.f32.mxu0 0.0
      %1030 = vmatmul.mubr.f32.gmra.mrb[0].mxu0 %v838
      %v1031 = vpop.f32.mrb[0].mxu0
      %v1032 = vadd.f32 0.0, %v1031
      %v1033 = vpop.f32.mrb[0].mxu0
      %v1034 = vadd.f32 0.0, %v1033
      %1035 = vmatprep.mubr.f32.mxu0 0.0
      %1036 = vmatmul.mubr.f32.gmra.mrb[0].mxu0 %v839
      %v1037 = vpop.f32.mrb[0].mxu0
      %v1038 = vadd.f32 0.0, %v1037
      %v1039 = vpop.f32.mrb[0].mxu0
      %v1040 = vadd.f32 0.0, %v1039
      %1041 = vmatprep.mubr.f32.mxu0 0.0
      %1042 = vmatmul.mubr.f32.gmra.mrb[0].mxu0 %v840
      %v1043 = vpop.f32.mrb[0].mxu0
      %v1044 = vadd.f32 0.0, %v1043
      %v1045 = vpop.f32.mrb[0].mxu0
      %v1046 = vadd.f32 0.0, %v1045
      %1047 = vmatprep.mubr.f32.mxu0 0.0
      %1048 = vmatmul.mubr.f32.gmra.mrb[0].mxu0 %v841
      %v1049 = vpop.f32.mrb[0].mxu0
      %v1050 = vadd.f32 0.0, %v1049
      %v1051 = vpop.f32.mrb[0].mxu0
      %v1052 = vadd.f32 0.0, %v1051
      %1053 = vmatprep.mubr.f32.mxu0 0.0
      %1054 = vmatmul.mubr.f32.gmra.mrb[0].mxu0 %v842
      %v1055 = vpop.f32.mrb[0].mxu0
      %v1056 = vadd.f32 0.0, %v1055
      %v1057 = vpop.f32.mrb[0].mxu0
      %v1058 = vadd.f32 0.0, %v1057
      %1059 = vmatprep.mubr.f32.mxu0 0.0
      %1060 = vmatmul.mubr.f32.gmra.mrb[0].mxu0 %v843
      %v1061 = vpop.f32.mrb[0].mxu0
      %v1062 = vadd.f32 0.0, %v1061
      %v1063 = vpop.f32.mrb[0].mxu0
      %v1064 = vadd.f32 0.0, %v1063
      %1065 = vmatprep.mubr.f32.mxu0 0.0
      %1066 = vmatmul.mubr.f32.gmra.mrb[0].mxu0 %v844
      %v1067 = vpop.f32.mrb[0].mxu0
      %v1068 = vadd.f32 0.0, %v1067
      %v1069 = vpop.f32.mrb[0].mxu0
      %v1070 = vadd.f32 0.0, %v1069
      %1071 = vmatprep.mubr.f32.mxu0 0.0
      %1072 = vmatmul.mubr.f32.gmra.mrb[0].mxu0 %v845
      %v1073 = vpop.f32.mrb[0].mxu0
      %v1074 = vadd.f32 0.0, %v1073
      %v1075 = vpop.f32.mrb[0].mxu0
      %v1076 = vadd.f32 0.0, %v1075
      %1077 = vmatprep.mubr.f32.mxu0 0.0
      %1078 = vmatmul.mubr.f32.gmra.mrb[0].mxu0 %v846
      %v1079 = vpop.f32.mrb[0].mxu0
      %v1080 = vadd.f32 0.0, %v1079
      %v1081 = vpop.f32.mrb[0].mxu0
      %v1082 = vadd.f32 0.0, %v1081
      %1083 = vmatprep.mubr.f32.mxu0 0.0
      %1084 = vmatmul.mubr.f32.gmra.mrb[0].mxu0 %v847
      %v1085 = vpop.f32.mrb[0].mxu0
      %v1086 = vadd.f32 0.0, %v1085
      %v1087 = vpop.f32.mrb[0].mxu0
      %v1088 = vadd.f32 0.0, %v1087
      %1089 = vmatprep.mubr.f32.mxu0 0.0
      %1090 = vmatmul.mubr.f32.gmra.mrb[0].mxu0 %v848
      %v1091 = vpop.f32.mrb[0].mxu0
      %v1092 = vadd.f32 0.0, %v1091
      %v1093 = vpop.f32.mrb[0].mxu0
      %v1094 = vadd.f32 0.0, %v1093
      %1095 = vmatprep.mubr.f32.mxu0 0.0
      %1096 = vmatmul.mubr.f32.gmra.mrb[0].mxu0 %v849
      %v1097 = vpop.f32.mrb[0].mxu0
      %v1098 = vadd.f32 0.0, %v1097
      %v1099 = vpop.f32.mrb[0].mxu0
      %v1100 = vadd.f32 0.0, %v1099
      %1101 = vmatprep.mubr.f32.mxu0 0.0
      %1102 = vmatmul.mubr.f32.gmra.mrb[0].mxu0 %v850
      %v1103 = vpop.f32.mrb[0].mxu0
      %v1104 = vadd.f32 0.0, %v1103
      %v1105 = vpop.f32.mrb[0].mxu0
      %v1106 = vadd.f32 0.0, %v1105
      %1107 = vdwg.mxu0
      %v1108 = vmax.f32 %v918, 0.0
      %v1109 = vmax.f32 %v920, 0.0
      %v1110 = vmax.f32 %v924, 0.0
      %v1111 = vmax.f32 %v926, 0.0
      %v1112 = vmax.f32 %v930, 0.0
      %v1113 = vmax.f32 %v932, 0.0
      %v1114 = vmax.f32 %v936, 0.0
      %v1115 = vmax.f32 %v938, 0.0
      %v1116 = vmax.f32 %v942, 0.0
      %v1117 = vmax.f32 %v944, 0.0
      %v1118 = vmax.f32 %v948, 0.0
      %v1119 = vmax.f32 %v950, 0.0
      %v1120 = vmax.f32 %v954, 0.0
      %v1121 = vmax.f32 %v956, 0.0
      %v1122 = vmax.f32 %v960, 0.0
      %v1123 = vmax.f32 %v962, 0.0
      %v1124 = vmax.f32 %v966, 0.0
      %v1125 = vmax.f32 %v968, 0.0
      %v1126 = vmax.f32 %v972, 0.0
      %v1127 = vmax.f32 %v974, 0.0
      %v1128 = vmax.f32 %v978, 0.0
      %v1129 = vmax.f32 %v980, 0.0
      %v1130 = vmax.f32 %v984, 0.0
      %v1131 = vmax.f32 %v986, 0.0
      %v1132 = vmax.f32 %v990, 0.0
      %v1133 = vmax.f32 %v992, 0.0
      %v1134 = vmax.f32 %v996, 0.0
      %v1135 = vmax.f32 %v998, 0.0
      %v1136 = vmax.f32 %v1002, 0.0
      %v1137 = vmax.f32 %v1004, 0.0
      %v1138 = vmax.f32 %v1008, 0.0
      %v1139 = vmax.f32 %v1010, 0.0
      %v1140 = vmax.f32 %v1014, 0.0
      %v1141 = vmax.f32 %v1016, 0.0
      %v1142 = vmax.f32 %v1020, 0.0
      %v1143 = vmax.f32 %v1022, 0.0
      %v1144 = vmax.f32 %v1026, 0.0
      %v1145 = vmax.f32 %v1028, 0.0
      %v1146 = vmax.f32 %v1032, 0.0
      %v1147 = vmax.f32 %v1034, 0.0
      %v1148 = vmax.f32 %v1038, 0.0
      %v1149 = vmax.f32 %v1040, 0.0
      %v1150 = vmax.f32 %v1044, 0.0
      %v1151 = vmax.f32 %v1046, 0.0
      %v1152 = vmax.f32 %v1050, 0.0
      %v1153 = vmax.f32 %v1052, 0.0
      %v1154 = vmax.f32 %v1056, 0.0
      %v1155 = vmax.f32 %v1058, 0.0
      %v1156 = vmax.f32 %v1062, 0.0
      %v1157 = vmax.f32 %v1064, 0.0
      %v1158 = vmax.f32 %v1068, 0.0
      %v1159 = vmax.f32 %v1070, 0.0
      %v1160 = vmax.f32 %v1074, 0.0
      %v1161 = vmax.f32 %v1076, 0.0
      %v1162 = vmax.f32 %v1080, 0.0
      %v1163 = vmax.f32 %v1082, 0.0
      %v1164 = vmax.f32 %v1086, 0.0
      %v1165 = vmax.f32 %v1088, 0.0
      %v1166 = vmax.f32 %v1092, 0.0
      %v1167 = vmax.f32 %v1094, 0.0
      %v1168 = vmax.f32 %v1098, 0.0
      %v1169 = vmax.f32 %v1100, 0.0
      %v1170 = vmax.f32 %v1104, 0.0
      %v1171 = vmax.f32 %v1106, 0.0
      %v1172 = vld [vmem:[%s4] sm:$0xff]
      %v1173 = vld [vmem:[%s4 + $0x8] sm:$0xff]
      %v1174 = vld [vmem:[%s4 + $0x10] sm:$0xff]
      %v1175 = vld [vmem:[%s4 + $0x18] sm:$0xff]
      %v1176 = vld [vmem:[%s4 + $0x20] sm:$0xff]
      %v1177 = vld [vmem:[%s4 + $0x28] sm:$0xff]
      %v1178 = vld [vmem:[%s4 + $0x30] sm:$0xff]
      %v1179 = vld [vmem:[%s4 + $0x38] sm:$0xff]
      %v1180 = vld [vmem:[%s4 + $0x40] sm:$0xff]
      %v1181 = vld [vmem:[%s4 + $0x48] sm:$0xff]
      %v1182 = vld [vmem:[%s4 + $0x50] sm:$0xff]
      %v1183 = vld [vmem:[%s4 + $0x58] sm:$0xff]
      %v1184 = vld [vmem:[%s4 + $0x60] sm:$0xff]
      %v1185 = vld [vmem:[%s4 + $0x68] sm:$0xff]
      %v1186 = vld [vmem:[%s4 + $0x70] sm:$0xff]
      %v1187 = vld [vmem:[%s4 + $0x78] sm:$0xff]
      %v1188 = vld [vmem:[%s4 + $0x80] sm:$0xff]
      %v1189 = vld [vmem:[%s4 + $0x88] sm:$0xff]
      %v1190 = vld [vmem:[%s4 + $0x90] sm:$0xff]
      %v1191 = vld [vmem:[%s4 + $0x98] sm:$0xff]
      %v1192 = vld [vmem:[%s4 + $0xa0] sm:$0xff]
      %v1193 = vld [vmem:[%s4 + $0xa8] sm:$0xff]
      %v1194 = vld [vmem:[%s4 + $0xb0] sm:$0xff]
      %v1195 = vld [vmem:[%s4 + $0xb8] sm:$0xff]
      %v1196 = vld [vmem:[%s4 + $0xc0] sm:$0xff]
      %v1197 = vld [vmem:[%s4 + $0xc8] sm:$0xff]
      %v1198 = vld [vmem:[%s4 + $0xd0] sm:$0xff]
      %v1199 = vld [vmem:[%s4 + $0xd8] sm:$0xff]
      %v1200 = vld [vmem:[%s4 + $0xe0] sm:$0xff]
      %v1201 = vld [vmem:[%s4 + $0xe8] sm:$0xff]
      %v1202 = vld [vmem:[%s4 + $0xf0] sm:$0xff]
      %v1203 = vld [vmem:[%s4 + $0xf8] sm:$0xff]
      %v1204 = vld [vmem:[%s4 + $0x100] sm:$0xff]
      %v1205 = vld [vmem:[%s4 + $0x108] sm:$0xff]
      %v1206 = vld [vmem:[%s4 + $0x110] sm:$0xff]
      %v1207 = vld [vmem:[%s4 + $0x118] sm:$0xff]
      %v1208 = vld [vmem:[%s4 + $0x120] sm:$0xff]
      %v1209 = vld [vmem:[%s4 + $0x128] sm:$0xff]
      %v1210 = vld [vmem:[%s4 + $0x130] sm:$0xff]
      %v1211 = vld [vmem:[%s4 + $0x138] sm:$0xff]
      %v1212 = vld [vmem:[%s4 + $0x140] sm:$0xff]
      %v1213 = vld [vmem:[%s4 + $0x148] sm:$0xff]
      %v1214 = vld [vmem:[%s4 + $0x150] sm:$0xff]
      %v1215 = vld [vmem:[%s4 + $0x158] sm:$0xff]
      %v1216 = vld [vmem:[%s4 + $0x160] sm:$0xff]
      %v1217 = vld [vmem:[%s4 + $0x168] sm:$0xff]
      %v1218 = vld [vmem:[%s4 + $0x170] sm:$0xff]
      %v1219 = vld [vmem:[%s4 + $0x178] sm:$0xff]
      %v1220 = vld [vmem:[%s4 + $0x180] sm:$0xff]
      %v1221 = vld [vmem:[%s4 + $0x188] sm:$0xff]
      %v1222 = vld [vmem:[%s4 + $0x190] sm:$0xff]
      %v1223 = vld [vmem:[%s4 + $0x198] sm:$0xff]
      %v1224 = vld [vmem:[%s4 + $0x1a0] sm:$0xff]
      %v1225 = vld [vmem:[%s4 + $0x1a8] sm:$0xff]
      %v1226 = vld [vmem:[%s4 + $0x1b0] sm:$0xff]
      %v1227 = vld [vmem:[%s4 + $0x1b8] sm:$0xff]
      %v1228 = vld [vmem:[%s4 + $0x1c0] sm:$0xff]
      %v1229 = vld [vmem:[%s4 + $0x1c8] sm:$0xff]
      %v1230 = vld [vmem:[%s4 + $0x1d0] sm:$0xff]
      %v1231 = vld [vmem:[%s4 + $0x1d8] sm:$0xff]
      %v1232 = vld [vmem:[%s4 + $0x1e0] sm:$0xff]
      %v1233 = vld [vmem:[%s4 + $0x1e8] sm:$0xff]
      %v1234 = vld [vmem:[%s4 + $0x1f0] sm:$0xff]
      %v1235 = vld [vmem:[%s4 + $0x1f8] sm:$0xff]
      %v1236 = vmul.f32 %v1108, %v1172
      %v1237 = vmul.f32 %v1109, %v1173
      %v1238 = vmul.f32 %v1110, %v1174
      %v1239 = vmul.f32 %v1111, %v1175
      %v1240 = vmul.f32 %v1112, %v1176
      %v1241 = vmul.f32 %v1113, %v1177
      %v1242 = vmul.f32 %v1114, %v1178
      %v1243 = vmul.f32 %v1115, %v1179
      %v1244 = vmul.f32 %v1116, %v1180
      %v1245 = vmul.f32 %v1117, %v1181
      %v1246 = vmul.f32 %v1118, %v1182
      %v1247 = vmul.f32 %v1119, %v1183
      %v1248 = vmul.f32 %v1120, %v1184
      %v1249 = vmul.f32 %v1121, %v1185
      %v1250 = vmul.f32 %v1122, %v1186
      %v1251 = vmul.f32 %v1123, %v1187
      %v1252 = vmul.f32 %v1124, %v1188
      %v1253 = vmul.f32 %v1125, %v1189
      %v1254 = vmul.f32 %v1126, %v1190
      %v1255 = vmul.f32 %v1127, %v1191
      %v1256 = vmul.f32 %v1128, %v1192
      %v1257 = vmul.f32 %v1129, %v1193
      %v1258 = vmul.f32 %v1130, %v1194
      %v1259 = vmul.f32 %v1131, %v1195
      %v1260 = vmul.f32 %v1132, %v1196
      %v1261 = vmul.f32 %v1133, %v1197
      %v1262 = vmul.f32 %v1134, %v1198
      %v1263 = vmul.f32 %v1135, %v1199
      %v1264 = vmul.f32 %v1136, %v1200
      %v1265 = vmul.f32 %v1137, %v1201
      %v1266 = vmul.f32 %v1138, %v1202
      %v1267 = vmul.f32 %v1139, %v1203
      %v1268 = vmul.f32 %v1140, %v1204
      %v1269 = vmul.f32 %v1141, %v1205
      %v1270 = vmul.f32 %v1142, %v1206
      %v1271 = vmul.f32 %v1143, %v1207
      %v1272 = vmul.f32 %v1144, %v1208
      %v1273 = vmul.f32 %v1145, %v1209
      %v1274 = vmul.f32 %v1146, %v1210
      %v1275 = vmul.f32 %v1147, %v1211
      %v1276 = vmul.f32 %v1148, %v1212
      %v1277 = vmul.f32 %v1149, %v1213
      %v1278 = vmul.f32 %v1150, %v1214
      %v1279 = vmul.f32 %v1151, %v1215
      %v1280 = vmul.f32 %v1152, %v1216
      %v1281 = vmul.f32 %v1153, %v1217
      %v1282 = vmul.f32 %v1154, %v1218
      %v1283 = vmul.f32 %v1155, %v1219
      %v1284 = vmul.f32 %v1156, %v1220
      %v1285 = vmul.f32 %v1157, %v1221
      %v1286 = vmul.f32 %v1158, %v1222
      %v1287 = vmul.f32 %v1159, %v1223
      %v1288 = vmul.f32 %v1160, %v1224
      %v1289 = vmul.f32 %v1161, %v1225
      %v1290 = vmul.f32 %v1162, %v1226
      %v1291 = vmul.f32 %v1163, %v1227
      %v1292 = vmul.f32 %v1164, %v1228
      %v1293 = vmul.f32 %v1165, %v1229
      %v1294 = vmul.f32 %v1166, %v1230
      %v1295 = vmul.f32 %v1167, %v1231
      %v1296 = vmul.f32 %v1168, %v1232
      %v1297 = vmul.f32 %v1169, %v1233
      %v1298 = vmul.f32 %v1170, %v1234
      %v1299 = vmul.f32 %v1171, %v1235
      %v1300 = vadd.f32 %v1236, %v1238
      %v1301 = vadd.f32 %v1300, %v1240
      %v1302 = vadd.f32 %v1301, %v1242
      %v1303 = vadd.f32 %v1302, %v1244
      %v1304 = vadd.f32 %v1303, %v1246
      %v1305 = vadd.f32 %v1304, %v1248
      %v1306 = vadd.f32 %v1305, %v1250
      %v1307 = vadd.f32 %v1306, %v1252
      %v1308 = vadd.f32 %v1307, %v1254
      %v1309 = vadd.f32 %v1308, %v1256
      %v1310 = vadd.f32 %v1309, %v1258
      %v1311 = vadd.f32 %v1310, %v1260
      %v1312 = vadd.f32 %v1311, %v1262
      %v1313 = vadd.f32 %v1312, %v1264
      %v1314 = vadd.f32 %v1313, %v1266
      %v1315 = vadd.f32 %v1314, %v1268
      %v1316 = vadd.f32 %v1315, %v1270
      %v1317 = vadd.f32 %v1316, %v1272
      %v1318 = vadd.f32 %v1317, %v1274
      %v1319 = vadd.f32 %v1318, %v1276
      %v1320 = vadd.f32 %v1319, %v1278
      %v1321 = vadd.f32 %v1320, %v1280
      %v1322 = vadd.f32 %v1321, %v1282
      %v1323 = vadd.f32 %v1322, %v1284
      %v1324 = vadd.f32 %v1323, %v1286
      %v1325 = vadd.f32 %v1324, %v1288
      %v1326 = vadd.f32 %v1325, %v1290
      %v1327 = vadd.f32 %v1326, %v1292
      %v1328 = vadd.f32 %v1327, %v1294
      %v1329 = vadd.f32 %v1328, %v1296
      %v1330 = vadd.f32 %v1329, %v1298
      %v1331 = vrot.slane %v1330, 4
      %v1332 = vadd.f32 %v1330, %v1331
      %v1333 = vrot.slane %v1332, 2
      %v1334 = vadd.f32 %v1332, %v1333
      %v1335 = vrot.slane %v1334, 1
      %v1336 = vadd.f32 %v1334, %v1335
      %v1337 = vadd.f32 %v1237, %v1239
      %v1338 = vadd.f32 %v1337, %v1241
      %v1339 = vadd.f32 %v1338, %v1243
      %v1340 = vadd.f32 %v1339, %v1245
      %v1341 = vadd.f32 %v1340, %v1247
      %v1342 = vadd.f32 %v1341, %v1249
      %v1343 = vadd.f32 %v1342, %v1251
      %v1344 = vadd.f32 %v1343, %v1253
      %v1345 = vadd.f32 %v1344, %v1255
      %v1346 = vadd.f32 %v1345, %v1257
      %v1347 = vadd.f32 %v1346, %v1259
      %v1348 = vadd.f32 %v1347, %v1261
      %v1349 = vadd.f32 %v1348, %v1263
      %v1350 = vadd.f32 %v1349, %v1265
      %v1351 = vadd.f32 %v1350, %v1267
      %v1352 = vadd.f32 %v1351, %v1269
      %v1353 = vadd.f32 %v1352, %v1271
      %v1354 = vadd.f32 %v1353, %v1273
      %v1355 = vadd.f32 %v1354, %v1275
      %v1356 = vadd.f32 %v1355, %v1277
      %v1357 = vadd.f32 %v1356, %v1279
      %v1358 = vadd.f32 %v1357, %v1281
      %v1359 = vadd.f32 %v1358, %v1283
      %v1360 = vadd.f32 %v1359, %v1285
      %v1361 = vadd.f32 %v1360, %v1287
      %v1362 = vadd.f32 %v1361, %v1289
      %v1363 = vadd.f32 %v1362, %v1291
      %v1364 = vadd.f32 %v1363, %v1293
      %v1365 = vadd.f32 %v1364, %v1295
      %v1366 = vadd.f32 %v1365, %v1297
      %v1367 = vadd.f32 %v1366, %v1299
      %v1368 = vrot.slane %v1367, 4
      %v1369 = vadd.f32 %v1367, %v1368
      %v1370 = vrot.slane %v1369, 2
      %v1371 = vadd.f32 %v1369, %v1370
      %v1372 = vrot.slane %v1371, 1
      %v1373 = vadd.f32 %v1371, %v1372
      %v1374 = vadd.f32 %v1336, 1.0
      %v1375 = vadd.f32 %v1373, 1.0
      %v1376 = vrsqrt.pop %v1374
      %v1377 = vrsqrt.pop %v1375
      %v1378 = vmul.f32 %v529, %v1376
      %v1379 = vmul.f32 %v531, %v1377
      %v1380 = vmul.f32 %v535, %v1376
      %v1381 = vmul.f32 %v537, %v1377
      %v1382 = vmul.f32 %v541, %v1376
      %v1383 = vmul.f32 %v543, %v1377
      %v1384 = vmul.f32 %v547, %v1376
      %v1385 = vmul.f32 %v549, %v1377
      %1386 = vmatprep.subr.mxu0 %v1237
      %1387 = vmatpush1.msra.mxu0 %v1236
      %1388 = vmatprep.subr.mxu0 %v1239
      %1389 = vmatpush1.msra.mxu0 %v1238
      %1390 = vmatprep.subr.mxu0 %v1241
      %1391 = vmatpush1.msra.mxu0 %v1240
      %1392 = vmatprep.subr.mxu0 %v1243
      %1393 = vmatpush1.msra.mxu0 %v1242
      %1394 = vmatprep.subr.mxu0 %v1245
      %1395 = vmatpush1.msra.mxu0 %v1244
      %1396 = vmatprep.subr.mxu0 %v1247
      %1397 = vmatpush1.msra.mxu0 %v1246
      %1398 = vmatprep.subr.mxu0 %v1249
      %1399 = vmatpush1.msra.mxu0 %v1248
      %1400 = vmatprep.subr.mxu0 %v1251
      %1401 = vmatpush1.msra.mxu0 %v1250
      %1402 = vmatprep.subr.mxu0 %v1253
      %1403 = vmatpush1.msra.mxu0 %v1252
      %1404 = vmatprep.subr.mxu0 %v1255
      %1405 = vmatpush1.msra.mxu0 %v1254
      %1406 = vmatprep.subr.mxu0 %v1257
      %1407 = vmatpush1.msra.mxu0 %v1256
      %1408 = vmatprep.subr.mxu0 %v1259
      %1409 = vmatpush1.msra.mxu0 %v1258
      %1410 = vmatprep.subr.mxu0 %v1261
      %1411 = vmatpush1.msra.mxu0 %v1260
      %1412 = vmatprep.subr.mxu0 %v1263
      %1413 = vmatpush1.msra.mxu0 %v1262
      %1414 = vmatprep.subr.mxu0 %v1265
      %1415 = vmatpush1.msra.mxu0 %v1264
      %1416 = vmatprep.subr.mxu0 %v1267
      %1417 = vmatpush1.msra.mxu0 %v1266
      %1418 = vmatprep.subr.mxu0 %v1269
      %1419 = vmatpush1.msra.mxu0 %v1268
      %1420 = vmatprep.subr.mxu0 %v1271
      %1421 = vmatpush1.msra.mxu0 %v1270
      %1422 = vmatprep.subr.mxu0 %v1273
      %1423 = vmatpush1.msra.mxu0 %v1272
      %1424 = vmatprep.subr.mxu0 %v1275
      %1425 = vmatpush1.msra.mxu0 %v1274
      %1426 = vmatprep.subr.mxu0 %v1277
      %1427 = vmatpush1.msra.mxu0 %v1276
      %1428 = vmatprep.subr.mxu0 %v1279
      %1429 = vmatpush1.msra.mxu0 %v1278
      %1430 = vmatprep.subr.mxu0 %v1281
      %1431 = vmatpush1.msra.mxu0 %v1280
      %1432 = vmatprep.subr.mxu0 %v1283
      %1433 = vmatpush1.msra.mxu0 %v1282
      %1434 = vmatprep.subr.mxu0 %v1285
      %1435 = vmatpush1.msra.mxu0 %v1284
      %1436 = vmatprep.subr.mxu0 %v1287
      %1437 = vmatpush1.msra.mxu0 %v1286
      %1438 = vmatprep.subr.mxu0 %v1289
      %1439 = vmatpush1.msra.mxu0 %v1288
      %1440 = vmatprep.subr.mxu0 %v1291
      %1441 = vmatpush1.msra.mxu0 %v1290
      %1442 = vmatprep.subr.mxu0 %v1293
      %1443 = vmatpush1.msra.mxu0 %v1292
      %1444 = vmatprep.subr.mxu0 %v1295
      %1445 = vmatpush1.msra.mxu0 %v1294
      %1446 = vmatprep.subr.mxu0 %v1297
      %1447 = vmatpush1.msra.mxu0 %v1296
      %1448 = vmatprep.subr.mxu0 %v1299
      %1449 = vmatpush1.msra.mxu0 %v1298
      %1450 = vmatprep.mubr.f32.mxu0 %v1379
      %1451 = vmatmul.mubr.f32.gmra.mrb[0].mxu0 %v1378
      %v1452 = vpop.f32.mrb[0].mxu0
      %v1453 = vadd.f32 %v1378, %v1452
      %v1454 = vpop.f32.mrb[0].mxu0
      %v1455 = vadd.f32 %v1379, %v1454
      %1456 = vmatprep.mubr.f32.mxu0 %v1381
      %1457 = vmatmul.mubr.f32.gmra.mrb[0].mxu0 %v1380
      %v1458 = vpop.f32.mrb[0].mxu0
      %v1459 = vadd.f32 %v1380, %v1458
      %v1460 = vpop.f32.mrb[0].mxu0
      %v1461 = vadd.f32 %v1381, %v1460
      %1462 = vmatprep.mubr.f32.mxu0 %v1383
      %1463 = vmatmul.mubr.f32.gmra.mrb[0].mxu0 %v1382
      %v1464 = vpop.f32.mrb[0].mxu0
      %v1465 = vadd.f32 %v1382, %v1464
      %v1466 = vpop.f32.mrb[0].mxu0
      %v1467 = vadd.f32 %v1383, %v1466
      %1468 = vmatprep.mubr.f32.mxu0 %v1385
      %1469 = vmatmul.mubr.f32.gmra.mrb[0].mxu0 %v1384
      %v1470 = vpop.f32.mrb[0].mxu0
      %v1471 = vadd.f32 %v1384, %v1470
      %v1472 = vpop.f32.mrb[0].mxu0
      %v1473 = vadd.f32 %v1385, %v1472
      %1474 = vdwg.mxu0
      %v1475 = vmul.f32 %v1453, %v1376
      %v1476 = vmul.f32 %v1455, %v1377
      %v1477 = vmul.f32 %v1459, %v1376
      %v1478 = vmul.f32 %v1461, %v1377
      %v1479 = vmul.f32 %v1465, %v1376
      %v1480 = vmul.f32 %v1467, %v1377
      %v1481 = vmul.f32 %v1471, %v1376
      %v1482 = vmul.f32 %v1473, %v1377
      %v1483 = vmax.f32 %v1475, 0.0
      %v1484 = vmax.f32 %v1476, 0.0
      %v1485 = vmax.f32 %v1477, 0.0
      %v1486 = vmax.f32 %v1478, 0.0
      %v1487 = vmax.f32 %v1479, 0.0
      %v1488 = vmax.f32 %v1480, 0.0
      %v1489 = vmax.f32 %v1481, 0.0
      %v1490 = vmax.f32 %v1482, 0.0
      %v1491 = vadd.f32 %v1483, %v245
      %v1492 = vadd.f32 %v1484, %v246
      %v1493 = vadd.f32 %v1485, %v247
      %v1494 = vadd.f32 %v1486, %v248
      %v1495 = vadd.f32 %v1487, %v249
      %v1496 = vadd.f32 %v1488, %v250
      %v1497 = vadd.f32 %v1489, %v251
      %v1498 = vadd.f32 %v1490, %v252
      %1499 = vst [vmem:[%s244] sm:$0xff] %v1491
      %1500 = vst [vmem:[%s244 + $0x8] sm:$0xff] %v1492
      %1501 = vst [vmem:[%s244 + $0x10] sm:$0xff] %v1493
      %1502 = vst [vmem:[%s244 + $0x18] sm:$0xff] %v1494
      %1503 = vst [vmem:[%s244 + $0x20] sm:$0xff] %v1495
      %1504 = vst [vmem:[%s244 + $0x28] sm:$0xff] %v1496
      %1505 = vst [vmem:[%s244 + $0x30] sm:$0xff] %v1497
      %1506 = vst [vmem:[%s244 + $0x38] sm:$0xff] %v1498
      %p1507 = scmp.lt.s32.totalorder %s16, 1
      %s1508 = scalar_select %p1507, %s16, 1
      %s1509 = smul.addr %s1508, 8
      %s1510 = smul.addr %s1509, 8
      %s1511 = scalar_lea.vmem %s5, %s1510
      // Predicated region
      $region41: #{fully_connect_gc_layer.1} parent=39 // pred_check
        %p1512 = pneg %p149
      $region42: #{fully_connect_gc_layer.1} parent=39 // pred_check_branch
        %1514 = sbr.rel (%p1512) target = $region44
      $region43: #{fully_connect_gc_layer.1} parent=39 // pred_region
        _
      $region44: #{fully_connect_gc_layer.1} parent=39 // pred_fallthru
        _
    $region40: #{fully_connect_gc_layer.1} parent=5 // pred_fallthru
      _
    %p1515 = scmp.le.s32.totalorder 2, %s11
    // Predicated region
    $region45: #{fully_connect_gc_layer.1} parent=5 // pred_check
      %p1516 = pneg %p1515
    $region46: #{fully_connect_gc_layer.1} parent=5 // pred_check_branch
      %1518 = sbr.rel (%p1516) target = $region48
    $region47: #{fully_connect_gc_layer.1} parent=5 // pred_region
      %s1519 = ssub.s32 %s11, 2
      // Predicated region
      $region49: #{fully_connect_gc_layer.1} parent=47 // pred_check
        %p1520 = pneg %p155
      $region50: #{fully_connect_gc_layer.1} parent=47 // pred_check_branch
        %1522 = sbr.rel (%p1520) target = $region52
      $region51: #{fully_connect_gc_layer.1} parent=47 // pred_region
        %p1523 = scmp.lt.s32.totalorder %s17, 1
        %s1524 = scalar_select %p1523, %s17, 1
        %s1525 = smul.addr %s1524, 8
        %s1526 = smul.addr %s1525, 8
        %s1527 = scalar_lea.vmem %s5, %s1526
      $region52: #{fully_connect_gc_layer.1} parent=47 // pred_fallthru
        _
    $region48: #{fully_connect_gc_layer.1} parent=5 // pred_fallthru
      _
  $region6: #{fully_connect_gc_layer.1} parent=0 // loop_footer
    %s15 = sadd.s32 1, %s11
  $region7: #{fully_connect_gc_layer.1} parent=0 // loop_footer_branch
    %10 = sbr.rel target = $region3
  $region8: #{fully_connect_gc_layer.1} parent=0 // loop_exit
    _

</llo_original>
